<compile_context>
chip_gen: v5e
topology: v5e:2x2
jax: 0.10.0
libtpu: 0.0.40
codegen_flags: <defaults>
</compile_context>

<pallas_src>
import functools

import jax
import jax.numpy as jnp
from jax.experimental import pallas as pl
from jax.experimental.pallas import tpu as pltpu


def _round_up(n, m):
    return ((n + m - 1) // m) * m


# ----------------------------- fused kernel -------------------------------- #

def _mynet_fused_kernel(x_ref, w1_ref, w2_ref, w3_ref, w4_ref, b_ref, o_ref,
                        xpad_ref, slab_ref, *, H, W, c1, c2):
    """Fused Conv3x3 -> Conv1x1 -> Conv3x3 -> Conv1x1 (BN folded, ReLU between).

    Layout: channels on sublanes, flattened H*W on the 128-lane axis.
      x_ref   : (1, cin_p, H*W)     input image, channels zero-padded to 8k
      w1_ref  : (c1, 9*cin_p)       3x3 weights, BN scale folded, im2col order
      w2_ref  : (c2, c1)            1x1 weights, BN scale folded
      w3_ref  : (c1, 9*c2)          3x3 weights, BN scale folded, im2col order
      w4_ref  : (c2, c1)            1x1 weights, BN scale folded
      b_ref   : (2*(c1+c2), 1)      packed per-channel shifts (conv bias + BN)
      o_ref   : (1, c2, H*W)
      xpad_ref: (max(cin_p,c2), H*W + 2*(W+1))   zero-halo scratch
      slab_ref: (9*max(cin_p,c2), H*W)           im2col contraction slab
    """
    HW = H * W
    PAD = W + 1

    # Static column index of every flattened spatial position (left/right edge
    # masks for the 3x3 taps).  W is a power of two here -> bitwise and.
    pos = jax.lax.broadcasted_iota(jnp.int32, (1, HW), 1)
    col = (pos & (W - 1)) if (W & (W - 1)) == 0 else (pos % W)
    not_first_col = col != 0
    not_last_col = col != (W - 1)

    def conv3x3(x, w_packed, shift):
        """3x3 'SAME' conv as one im2col matmul.  x: (cin, HW) -> (cout, HW)."""
        cin = x.shape[0]
        # Zero-halo padded flat image: [0]*PAD ++ x ++ [0]*PAD.
        xpad_ref[0:cin, :] = jnp.zeros((cin, HW + 2 * PAD), jnp.float32)
        xpad_ref[0:cin, PAD:PAD + HW] = x
        # Write the 9 shifted taps into the (9*cin, HW) contraction slab.
        k = 0
        for dy in (-1, 0, 1):
            for dx in (-1, 0, 1):
                off = dy * W + dx
                tap = xpad_ref[0:cin, PAD + off:PAD + off + HW]
                if dx == 1:            # value pulled from w+1: kill w == W-1
                    tap = jnp.where(not_last_col, tap, 0.0)
                elif dx == -1:         # value pulled from w-1: kill w == 0
                    tap = jnp.where(not_first_col, tap, 0.0)
                slab_ref[k * cin:(k + 1) * cin, :] = tap
                k += 1
        # Single MXU pass: (cout, 9*cin) @ (9*cin, HW), lane-dense N = HW.
        return jnp.dot(w_packed, slab_ref[0:9 * cin, :],
                       preferred_element_type=jnp.float32) + shift

    # Packed per-channel shifts (conv bias + inference-mode BN pre-folded).
    b1 = b_ref[0:c1, :]
    b2 = b_ref[c1:c1 + c2, :]
    b3 = b_ref[c1 + c2:2 * c1 + c2, :]
    b4 = b_ref[2 * c1 + c2:2 * (c1 + c2), :]

    x0 = x_ref[0].astype(jnp.float32)                              # (cin_p, HW)

    y1 = jnp.maximum(conv3x3(x0, w1_ref[...], b1), 0.0)            # (c1, HW)
    y2 = jnp.maximum(
        jnp.dot(w2_ref[...], y1, preferred_element_type=jnp.float32) + b2, 0.0)
    y3 = jnp.maximum(conv3x3(y2, w3_ref[...], b3), 0.0)            # (c1, HW)
    y4 = jnp.dot(w4_ref[...], y3, preferred_element_type=jnp.float32) + b4
    o_ref[0] = y4.astype(o_ref.dtype)                              # (c2, HW)


# ----------------------------- wrapper -------------------------------------- #

@jax.jit
def mynet_forward(x_nchw, fused):
    """x_nchw: (N, Cin, H, W) float32.  Returns (N, mod_dim2, H, W) (NCHW)."""
    N, Cin, H, W = x_nchw.shape
    HW = H * W
    c1 = fused["w1"].shape[0]
    c2 = fused["w4"].shape[0]
    cin_p = fused["w1"].shape[1] // 9
    c_max = max(cin_p, c2)

    # NCHW is already channels-major / spatial-minor: just flatten H*W onto the
    # lane axis (no NHWC transpose) and zero-pad channels to a multiple of 8
    # sublanes so the in-kernel slab writes stay tile-aligned (tiny, KB-scale).
    x = x_nchw.reshape(N, Cin, HW)
    if cin_p != Cin:
        x = jnp.pad(x, ((0, 0), (0, cin_p - Cin), (0, 0)))

    kern = functools.partial(_mynet_fused_kernel, H=H, W=W, c1=c1, c2=c2)
    out = pl.pallas_call(
        kern,
        out_shape=jax.ShapeDtypeStruct((N, c2, HW), x_nchw.dtype),
        grid=(N,),
        in_specs=[
            pl.BlockSpec((1, cin_p, HW), lambda n: (n, 0, 0)),
            pl.BlockSpec(fused["w1"].shape, lambda n: (0, 0)),
            pl.BlockSpec(fused["w2"].shape, lambda n: (0, 0)),
            pl.BlockSpec(fused["w3"].shape, lambda n: (0, 0)),
            pl.BlockSpec(fused["w4"].shape, lambda n: (0, 0)),
            pl.BlockSpec(fused["b"].shape, lambda n: (0, 0)),
        ],
        out_specs=pl.BlockSpec((1, c2, HW), lambda n: (n, 0, 0)),
        scratch_shapes=[
            pltpu.VMEM((c_max, HW + 2 * (W + 1)), jnp.float32),   # halo pad
            pltpu.VMEM((9 * c_max, HW), jnp.float32),             # im2col slab
        ],
        compiler_params=pltpu.CompilerParams(
            dimension_semantics=("parallel",)),   # N=2 -> both v7x TCs busy
    )(x, fused["w1"], fused["w2"], fused["w3"], fused["w4"], fused["b"])
    return out.reshape(N, c2, H, W)


# ----------------------------- parameter setup ------------------------------ #

def _fold_bn(conv_bias, gamma, beta, mean, var, eps=1e-5):
    """Fold conv bias + inference-mode BatchNorm into (scale, shift)."""
    scale = gamma / jnp.sqrt(var + eps)
    shift = (conv_bias - mean) * scale + beta
    return scale, shift


def make_params(key, inp_dim, mod_dim1, mod_dim2, dtype=jnp.float32):
    """Deterministic synthetic parameters, shapes per MyNet.__init__ (HWIO)."""
    layer_shapes = [
        (3, 3, inp_dim, mod_dim1),
        (1, 1, mod_dim1, mod_dim2),
        (3, 3, mod_dim2, mod_dim1),
        (1, 1, mod_dim1, mod_dim2),
    ]
    params = []
    for (kh, kw, cin, cout) in layer_shapes:
        key, kw_, kb_, kg_, kbe_, km_, kv_ = jax.random.split(key, 7)
        w = jax.random.normal(kw_, (kh, kw, cin, cout), dtype) * 0.1
        b = jax.random.normal(kb_, (cout,), dtype) * 0.05
        gamma = 1.0 + 0.1 * jax.random.normal(kg_, (cout,), dtype)
        beta = 0.05 * jax.random.normal(kbe_, (cout,), dtype)
        mean = 0.05 * jax.random.normal(km_, (cout,), dtype)
        var = 1.0 + 0.1 * jax.random.uniform(kv_, (cout,), dtype)
        scale, shift = _fold_bn(b, gamma, beta, mean, var)
        params.append({"w": w, "scale": scale, "shift": shift})
    return params


def pack_fused_params(params):
    """Fold BN scales into the weights and pack them for the fused kernel.

    Weights become (Cout, K) matrices (K = Cin for 1x1, K = 9*Cin_padded for
    3x3 in im2col tap-major / channel-minor order); the four per-channel shift
    vectors are concatenated into one (2*(c1+c2), 1) column.
    """
    w1_hwio, w2_hwio, w3_hwio, w4_hwio = (p["w"] for p in params)
    cin = w1_hwio.shape[2]
    c1 = w1_hwio.shape[3]
    c2 = w2_hwio.shape[3]
    cin_p = _round_up(cin, 8)

    def fold(w_hwio, scale):          # BN scale folds into output channels
        return w_hwio * scale

    w1 = fold(w1_hwio, params[0]["scale"])                          # (3,3,cin,c1)
    w1 = jnp.pad(w1, ((0, 0), (0, 0), (0, cin_p - cin), (0, 0)))
    w1 = jnp.transpose(w1, (3, 0, 1, 2)).reshape(c1, 9 * cin_p)
    w2 = jnp.transpose(fold(w2_hwio, params[1]["scale"])[0, 0], (1, 0))  # (c2,c1)
    w3 = jnp.transpose(fold(w3_hwio, params[2]["scale"]),
                       (3, 0, 1, 2)).reshape(c1, 9 * c2)
    w4 = jnp.transpose(fold(w4_hwio, params[3]["scale"])[0, 0], (1, 0))  # (c2,c1)
    b = jnp.concatenate([params[0]["shift"], params[1]["shift"],
                         params[2]["shift"], params[3]["shift"]])[:, None]
    return {"w1": w1, "w2": w2, "w3": w3, "w4": w4, "b": b}


# ----------------------------- reference (pure JAX) ------------------------- #

def _ref_forward(x_nchw, params):
    x = jnp.transpose(x_nchw, (0, 2, 3, 1))
    cfgs = [(params[0], "SAME", True), (params[1], "VALID", True),
            (params[2], "SAME", True), (params[3], "VALID", False)]
    for p, pad, relu in cfgs:
        x = jax.lax.conv_general_dilated(
            x, p["w"], window_strides=(1, 1), padding=pad,
            dimension_numbers=("NHWC", "HWIO", "NHWC"))
        x = x * p["scale"] + p["shift"]
        if relu:
            x = jnp.maximum(x, 0.0)
    return jnp.transpose(x, (0, 3, 1, 2))


# ----------------------------- main ----------------------------------------- #

if __name__ == "__main__":
    N, INP_DIM, MOD_DIM1, MOD_DIM2, H, W = 2, 4, 32, 16, 16, 16

    key = jax.random.PRNGKey(0)
    kx, kp = jax.random.split(key)
    x = jax.random.normal(kx, (N, INP_DIM, H, W), jnp.float32)   # NCHW input
    params = make_params(kp, INP_DIM, MOD_DIM1, MOD_DIM2)
    fused = pack_fused_params(params)

    out = jax.block_until_ready(mynet_forward(x, fused))
    assert out.shape == (N, MOD_DIM2, H, W), out.shape

    # Sanity check against a pure-JAX reference of the same math.
    ref = jax.block_until_ready(_ref_forward(x, params))
    err = float(jnp.max(jnp.abs(out - ref)))
    assert err < 1e-3, f"max abs err {err}"

    print("KERNEL_OK")
</pallas_src>

<mosaic_0001>
module attributes {stable_mosaic.version = 11 : i64} {
  func.func @_mynet_fused_kernel(%arg0: i32, %arg1: memref<1x8x256xf32, #tpu.memory_space<vmem>>, %arg2: memref<32x72xf32, #tpu.memory_space<vmem>>, %arg3: memref<16x32xf32, #tpu.memory_space<vmem>>, %arg4: memref<32x144xf32, #tpu.memory_space<vmem>>, %arg5: memref<16x32xf32, #tpu.memory_space<vmem>>, %arg6: memref<96x1xf32, #tpu.memory_space<vmem>>, %arg7: memref<1x16x256xf32, #tpu.memory_space<vmem>>, %arg8: memref<16x290xf32, #tpu.memory_space<vmem>>, %arg9: memref<144x256xf32, #tpu.memory_space<vmem>>) attributes {dimension_semantics = [#tpu.dimension_semantics<parallel>], iteration_bounds = array<i64: 2>, scalar_prefetch = 0 : i64, scratch_operands = 2 : i64, tpu.core_type = #tpu.core_type<tc>, window_params = [{transform_indices = @transform_0, window_bounds = array<i64: 1, 8, 256>}, {pipeline_mode = #tpu.pipeline_mode<synchronous>, transform_indices = @transform_1, window_bounds = array<i64: 32, 72>}, {pipeline_mode = #tpu.pipeline_mode<synchronous>, transform_indices = @transform_2, window_bounds = array<i64: 16, 32>}, {pipeline_mode = #tpu.pipeline_mode<synchronous>, transform_indices = @transform_3, window_bounds = array<i64: 32, 144>}, {pipeline_mode = #tpu.pipeline_mode<synchronous>, transform_indices = @transform_4, window_bounds = array<i64: 16, 32>}, {pipeline_mode = #tpu.pipeline_mode<synchronous>, transform_indices = @transform_5, window_bounds = array<i64: 96, 1>}, {transform_indices = @transform_6, window_bounds = array<i64: 1, 16, 256>}]} {
    %0 = tpu.iota {dimensions = array<i32: 1>} : vector<1x256xi32>
    %c15_i32 = arith.constant 15 : i32
    %1 = vector.broadcast %c15_i32 : i32 to vector<1x256xi32>
    %2 = arith.andi %0, %1 : vector<1x256xi32>
    %c0_i32 = arith.constant 0 : i32
    %3 = vector.broadcast %c0_i32 : i32 to vector<1x256xi32>
    %4 = arith.cmpi ne, %2, %3 : vector<1x256xi32>
    %c15_i32_0 = arith.constant 15 : i32
    %5 = vector.broadcast %c15_i32_0 : i32 to vector<1x256xi32>
    %6 = arith.cmpi ne, %2, %5 : vector<1x256xi32>
    %c0 = arith.constant 0 : index
    %c0_1 = arith.constant 0 : index
    %7 = vector.load %arg6[%c0, %c0_1] : memref<96x1xf32, #tpu.memory_space<vmem>>, vector<32x1xf32>
    %c32 = arith.constant 32 : index
    %c0_2 = arith.constant 0 : index
    %8 = vector.load %arg6[%c32, %c0_2] : memref<96x1xf32, #tpu.memory_space<vmem>>, vector<16x1xf32>
    %c48 = arith.constant 48 : index
    %c0_3 = arith.constant 0 : index
    %9 = vector.load %arg6[%c48, %c0_3] : memref<96x1xf32, #tpu.memory_space<vmem>>, vector<32x1xf32>
    %c80 = arith.constant 80 : index
    %c0_4 = arith.constant 0 : index
    %10 = vector.load %arg6[%c80, %c0_4] : memref<96x1xf32, #tpu.memory_space<vmem>>, vector<16x1xf32>
    %c0_5 = arith.constant 0 : index
    %c0_6 = arith.constant 0 : index
    %c0_7 = arith.constant 0 : index
    %11 = vector.load %arg1[%c0_5, %c0_6, %c0_7] : memref<1x8x256xf32, #tpu.memory_space<vmem>>, vector<1x8x256xf32>
    %12 = vector.shape_cast %11 : vector<1x8x256xf32> to vector<8x256xf32>
    %c0_8 = arith.constant 0 : index
    %c0_9 = arith.constant 0 : index
    %13 = vector.load %arg2[%c0_8, %c0_9] : memref<32x72xf32, #tpu.memory_space<vmem>>, vector<32x72xf32>
    %cst = arith.constant 0.000000e+00 : f32
    %14 = vector.broadcast %cst : f32 to vector<8x290xf32>
    %c0_10 = arith.constant 0 : index
    %c0_11 = arith.constant 0 : index
    %15 = vector.load %arg8[%c0_10, %c0_11] : memref<16x290xf32, #tpu.memory_space<vmem>>, vector<8x290xf32>
    tpu.vector_store %arg8[%c0_10, %c0_11], %14 {strides = array<i32>} : memref<16x290xf32, #tpu.memory_space<vmem>>, vector<8x290xf32>,
    %c0_12 = arith.constant 0 : index
    %c17 = arith.constant 17 : index
    %16 = vector.load %arg8[%c0_12, %c17] : memref<16x290xf32, #tpu.memory_space<vmem>>, vector<8x256xf32>
    tpu.vector_store %arg8[%c0_12, %c17], %12 {strides = array<i32>} : memref<16x290xf32, #tpu.memory_space<vmem>>, vector<8x256xf32>,
    %c0_13 = arith.constant 0 : index
    %c0_14 = arith.constant 0 : index
    %17 = vector.load %arg8[%c0_13, %c0_14] : memref<16x290xf32, #tpu.memory_space<vmem>>, vector<8x256xf32>
    %cst_15 = arith.constant 0.000000e+00 : f32
    %18 = vector.shape_cast %4 : vector<1x256xi1> to vector<1x256xi1>
    %19 = vector.broadcast %18 : vector<1x256xi1> to vector<8x256xi1>
    %20 = vector.broadcast %cst_15 : f32 to vector<8x256xf32>
    %21 = arith.select %19, %17, %20 : vector<8x256xi1>, vector<8x256xf32>
    %c0_16 = arith.constant 0 : index
    %c0_17 = arith.constant 0 : index
    %22 = vector.load %arg9[%c0_16, %c0_17] : memref<144x256xf32, #tpu.memory_space<vmem>>, vector<8x256xf32>
    tpu.vector_store %arg9[%c0_16, %c0_17], %21 {strides = array<i32>} : memref<144x256xf32, #tpu.memory_space<vmem>>, vector<8x256xf32>,
    %c0_18 = arith.constant 0 : index
    %c1 = arith.constant 1 : index
    %23 = vector.load %arg8[%c0_18, %c1] : memref<16x290xf32, #tpu.memory_space<vmem>>, vector<8x256xf32>
    %c8 = arith.constant 8 : index
    %c0_19 = arith.constant 0 : index
    %24 = vector.load %arg9[%c8, %c0_19] : memref<144x256xf32, #tpu.memory_space<vmem>>, vector<8x256xf32>
    tpu.vector_store %arg9[%c8, %c0_19], %23 {strides = array<i32>} : memref<144x256xf32, #tpu.memory_space<vmem>>, vector<8x256xf32>,
    %c0_20 = arith.constant 0 : index
    %c2 = arith.constant 2 : index
    %25 = vector.load %arg8[%c0_20, %c2] : memref<16x290xf32, #tpu.memory_space<vmem>>, vector<8x256xf32>
    %cst_21 = arith.constant 0.000000e+00 : f32
    %26 = vector.shape_cast %6 : vector<1x256xi1> to vector<1x256xi1>
    %27 = vector.broadcast %26 : vector<1x256xi1> to vector<8x256xi1>
    %28 = vector.broadcast %cst_21 : f32 to vector<8x256xf32>
    %29 = arith.select %27, %25, %28 : vector<8x256xi1>, vector<8x256xf32>
    %c16 = arith.constant 16 : index
    %c0_22 = arith.constant 0 : index
    %30 = vector.load %arg9[%c16, %c0_22] : memref<144x256xf32, #tpu.memory_space<vmem>>, vector<8x256xf32>
    tpu.vector_store %arg9[%c16, %c0_22], %29 {strides = array<i32>} : memref<144x256xf32, #tpu.memory_space<vmem>>, vector<8x256xf32>,
    %c0_23 = arith.constant 0 : index
    %c16_24 = arith.constant 16 : index
    %31 = vector.load %arg8[%c0_23, %c16_24] : memref<16x290xf32, #tpu.memory_space<vmem>>, vector<8x256xf32>
    %cst_25 = arith.constant 0.000000e+00 : f32
    %32 = vector.shape_cast %4 : vector<1x256xi1> to vector<1x256xi1>
    %33 = vector.broadcast %32 : vector<1x256xi1> to vector<8x256xi1>
    %34 = vector.broadcast %cst_25 : f32 to vector<8x256xf32>
    %35 = arith.select %33, %31, %34 : vector<8x256xi1>, vector<8x256xf32>
    %c24 = arith.constant 24 : index
    %c0_26 = arith.constant 0 : index
    %36 = vector.load %arg9[%c24, %c0_26] : memref<144x256xf32, #tpu.memory_space<vmem>>, vector<8x256xf32>
    tpu.vector_store %arg9[%c24, %c0_26], %35 {strides = array<i32>} : memref<144x256xf32, #tpu.memory_space<vmem>>, vector<8x256xf32>,
    %c0_27 = arith.constant 0 : index
    %c17_28 = arith.constant 17 : index
    %37 = vector.load %arg8[%c0_27, %c17_28] : memref<16x290xf32, #tpu.memory_space<vmem>>, vector<8x256xf32>
    %c32_29 = arith.constant 32 : index
    %c0_30 = arith.constant 0 : index
    %38 = vector.load %arg9[%c32_29, %c0_30] : memref<144x256xf32, #tpu.memory_space<vmem>>, vector<8x256xf32>
    tpu.vector_store %arg9[%c32_29, %c0_30], %37 {strides = array<i32>} : memref<144x256xf32, #tpu.memory_space<vmem>>, vector<8x256xf32>,
    %c0_31 = arith.constant 0 : index
    %c18 = arith.constant 18 : index
    %39 = vector.load %arg8[%c0_31, %c18] : memref<16x290xf32, #tpu.memory_space<vmem>>, vector<8x256xf32>
    %cst_32 = arith.constant 0.000000e+00 : f32
    %40 = vector.shape_cast %6 : vector<1x256xi1> to vector<1x256xi1>
    %41 = vector.broadcast %40 : vector<1x256xi1> to vector<8x256xi1>
    %42 = vector.broadcast %cst_32 : f32 to vector<8x256xf32>
    %43 = arith.select %41, %39, %42 : vector<8x256xi1>, vector<8x256xf32>
    %c40 = arith.constant 40 : index
    %c0_33 = arith.constant 0 : index
    %44 = vector.load %arg9[%c40, %c0_33] : memref<144x256xf32, #tpu.memory_space<vmem>>, vector<8x256xf32>
    tpu.vector_store %arg9[%c40, %c0_33], %43 {strides = array<i32>} : memref<144x256xf32, #tpu.memory_space<vmem>>, vector<8x256xf32>,
    %c0_34 = arith.constant 0 : index
    %c32_35 = arith.constant 32 : index
    %45 = vector.load %arg8[%c0_34, %c32_35] : memref<16x290xf32, #tpu.memory_space<vmem>>, vector<8x256xf32>
    %cst_36 = arith.constant 0.000000e+00 : f32
    %46 = vector.shape_cast %4 : vector<1x256xi1> to vector<1x256xi1>
    %47 = vector.broadcast %46 : vector<1x256xi1> to vector<8x256xi1>
    %48 = vector.broadcast %cst_36 : f32 to vector<8x256xf32>
    %49 = arith.select %47, %45, %48 : vector<8x256xi1>, vector<8x256xf32>
    %c48_37 = arith.constant 48 : index
    %c0_38 = arith.constant 0 : index
    %50 = vector.load %arg9[%c48_37, %c0_38] : memref<144x256xf32, #tpu.memory_space<vmem>>, vector<8x256xf32>
    tpu.vector_store %arg9[%c48_37, %c0_38], %49 {strides = array<i32>} : memref<144x256xf32, #tpu.memory_space<vmem>>, vector<8x256xf32>,
    %c0_39 = arith.constant 0 : index
    %c33 = arith.constant 33 : index
    %51 = vector.load %arg8[%c0_39, %c33] : memref<16x290xf32, #tpu.memory_space<vmem>>, vector<8x256xf32>
    %c56 = arith.constant 56 : index
    %c0_40 = arith.constant 0 : index
    %52 = vector.load %arg9[%c56, %c0_40] : memref<144x256xf32, #tpu.memory_space<vmem>>, vector<8x256xf32>
    tpu.vector_store %arg9[%c56, %c0_40], %51 {strides = array<i32>} : memref<144x256xf32, #tpu.memory_space<vmem>>, vector<8x256xf32>,
    %c0_41 = arith.constant 0 : index
    %c34 = arith.constant 34 : index
    %53 = vector.load %arg8[%c0_41, %c34] : memref<16x290xf32, #tpu.memory_space<vmem>>, vector<8x256xf32>
    %cst_42 = arith.constant 0.000000e+00 : f32
    %54 = vector.shape_cast %6 : vector<1x256xi1> to vector<1x256xi1>
    %55 = vector.broadcast %54 : vector<1x256xi1> to vector<8x256xi1>
    %56 = vector.broadcast %cst_42 : f32 to vector<8x256xf32>
    %57 = arith.select %55, %53, %56 : vector<8x256xi1>, vector<8x256xf32>
    %c64 = arith.constant 64 : index
    %c0_43 = arith.constant 0 : index
    %58 = vector.load %arg9[%c64, %c0_43] : memref<144x256xf32, #tpu.memory_space<vmem>>, vector<8x256xf32>
    tpu.vector_store %arg9[%c64, %c0_43], %57 {strides = array<i32>} : memref<144x256xf32, #tpu.memory_space<vmem>>, vector<8x256xf32>,
    %c0_44 = arith.constant 0 : index
    %c0_45 = arith.constant 0 : index
    %59 = vector.load %arg9[%c0_44, %c0_45] : memref<144x256xf32, #tpu.memory_space<vmem>>, vector<72x256xf32>
    %cst_46 = arith.constant dense<0.000000e+00> : vector<32x256xf32>
    %60 = tpu.matmul %13, %59, %cst_46 {dimension_numbers = #tpu.dot_dimension_numbers<[1], [0], [0], [1], [0, 0, 1, 1], [], []>} : vector<32x72xf32>, vector<72x256xf32>, vector<32x256xf32> -> vector<32x256xf32>
    %61 = vector.broadcast %7 : vector<32x1xf32> to vector<32x256xf32>
    %62 = arith.addf %60, %61 : vector<32x256xf32>
    %cst_47 = arith.constant 0.000000e+00 : f32
    %63 = vector.broadcast %cst_47 : f32 to vector<32x256xf32>
    %64 = arith.maximumf %62, %63 : vector<32x256xf32>
    %c0_48 = arith.constant 0 : index
    %c0_49 = arith.constant 0 : index
    %65 = vector.load %arg3[%c0_48, %c0_49] : memref<16x32xf32, #tpu.memory_space<vmem>>, vector<16x32xf32>
    %cst_50 = arith.constant dense<0.000000e+00> : vector<16x256xf32>
    %66 = tpu.matmul %65, %64, %cst_50 {dimension_numbers = #tpu.dot_dimension_numbers<[1], [0], [0], [1], [0, 0, 1, 1], [], []>} : vector<16x32xf32>, vector<32x256xf32>, vector<16x256xf32> -> vector<16x256xf32>
    %67 = vector.broadcast %8 : vector<16x1xf32> to vector<16x256xf32>
    %68 = arith.addf %66, %67 : vector<16x256xf32>
    %cst_51 = arith.constant 0.000000e+00 : f32
    %69 = vector.broadcast %cst_51 : f32 to vector<16x256xf32>
    %70 = arith.maximumf %68, %69 : vector<16x256xf32>
    %c0_52 = arith.constant 0 : index
    %c0_53 = arith.constant 0 : index
    %71 = vector.load %arg4[%c0_52, %c0_53] : memref<32x144xf32, #tpu.memory_space<vmem>>, vector<32x144xf32>
    %cst_54 = arith.constant 0.000000e+00 : f32
    %72 = vector.broadcast %cst_54 : f32 to vector<16x290xf32>
    %c0_55 = arith.constant 0 : index
    %c0_56 = arith.constant 0 : index
    %73 = vector.load %arg8[%c0_55, %c0_56] : memref<16x290xf32, #tpu.memory_space<vmem>>, vector<16x290xf32>
    tpu.vector_store %arg8[%c0_55, %c0_56], %72 {strides = array<i32>} : memref<16x290xf32, #tpu.memory_space<vmem>>, vector<16x290xf32>,
    %c0_57 = arith.constant 0 : index
    %c17_58 = arith.constant 17 : index
    %74 = vector.load %arg8[%c0_57, %c17_58] : memref<16x290xf32, #tpu.memory_space<vmem>>, vector<16x256xf32>
    tpu.vector_store %arg8[%c0_57, %c17_58], %70 {strides = array<i32>} : memref<16x290xf32, #tpu.memory_space<vmem>>, vector<16x256xf32>,
    %c0_59 = arith.constant 0 : index
    %c0_60 = arith.constant 0 : index
    %75 = vector.load %arg8[%c0_59, %c0_60] : memref<16x290xf32, #tpu.memory_space<vmem>>, vector<16x256xf32>
    %cst_61 = arith.constant 0.000000e+00 : f32
    %76 = vector.shape_cast %4 : vector<1x256xi1> to vector<1x256xi1>
    %77 = vector.broadcast %76 : vector<1x256xi1> to vector<16x256xi1>
    %78 = vector.broadcast %cst_61 : f32 to vector<16x256xf32>
    %79 = arith.select %77, %75, %78 : vector<16x256xi1>, vector<16x256xf32>
    %c0_62 = arith.constant 0 : index
    %c0_63 = arith.constant 0 : index
    %80 = vector.load %arg9[%c0_62, %c0_63] : memref<144x256xf32, #tpu.memory_space<vmem>>, vector<16x256xf32>
    tpu.vector_store %arg9[%c0_62, %c0_63], %79 {strides = array<i32>} : memref<144x256xf32, #tpu.memory_space<vmem>>, vector<16x256xf32>,
    %c0_64 = arith.constant 0 : index
    %c1_65 = arith.constant 1 : index
    %81 = vector.load %arg8[%c0_64, %c1_65] : memref<16x290xf32, #tpu.memory_space<vmem>>, vector<16x256xf32>
    %c16_66 = arith.constant 16 : index
    %c0_67 = arith.constant 0 : index
    %82 = vector.load %arg9[%c16_66, %c0_67] : memref<144x256xf32, #tpu.memory_space<vmem>>, vector<16x256xf32>
    tpu.vector_store %arg9[%c16_66, %c0_67], %81 {strides = array<i32>} : memref<144x256xf32, #tpu.memory_space<vmem>>, vector<16x256xf32>,
    %c0_68 = arith.constant 0 : index
    %c2_69 = arith.constant 2 : index
    %83 = vector.load %arg8[%c0_68, %c2_69] : memref<16x290xf32, #tpu.memory_space<vmem>>, vector<16x256xf32>
    %cst_70 = arith.constant 0.000000e+00 : f32
    %84 = vector.shape_cast %6 : vector<1x256xi1> to vector<1x256xi1>
    %85 = vector.broadcast %84 : vector<1x256xi1> to vector<16x256xi1>
    %86 = vector.broadcast %cst_70 : f32 to vector<16x256xf32>
    %87 = arith.select %85, %83, %86 : vector<16x256xi1>, vector<16x256xf32>
    %c32_71 = arith.constant 32 : index
    %c0_72 = arith.constant 0 : index
    %88 = vector.load %arg9[%c32_71, %c0_72] : memref<144x256xf32, #tpu.memory_space<vmem>>, vector<16x256xf32>
    tpu.vector_store %arg9[%c32_71, %c0_72], %87 {strides = array<i32>} : memref<144x256xf32, #tpu.memory_space<vmem>>, vector<16x256xf32>,
    %c0_73 = arith.constant 0 : index
    %c16_74 = arith.constant 16 : index
    %89 = vector.load %arg8[%c0_73, %c16_74] : memref<16x290xf32, #tpu.memory_space<vmem>>, vector<16x256xf32>
    %cst_75 = arith.constant 0.000000e+00 : f32
    %90 = vector.shape_cast %4 : vector<1x256xi1> to vector<1x256xi1>
    %91 = vector.broadcast %90 : vector<1x256xi1> to vector<16x256xi1>
    %92 = vector.broadcast %cst_75 : f32 to vector<16x256xf32>
    %93 = arith.select %91, %89, %92 : vector<16x256xi1>, vector<16x256xf32>
    %c48_76 = arith.constant 48 : index
    %c0_77 = arith.constant 0 : index
    %94 = vector.load %arg9[%c48_76, %c0_77] : memref<144x256xf32, #tpu.memory_space<vmem>>, vector<16x256xf32>
    tpu.vector_store %arg9[%c48_76, %c0_77], %93 {strides = array<i32>} : memref<144x256xf32, #tpu.memory_space<vmem>>, vector<16x256xf32>,
    %c0_78 = arith.constant 0 : index
    %c17_79 = arith.constant 17 : index
    %95 = vector.load %arg8[%c0_78, %c17_79] : memref<16x290xf32, #tpu.memory_space<vmem>>, vector<16x256xf32>
    %c64_80 = arith.constant 64 : index
    %c0_81 = arith.constant 0 : index
    %96 = vector.load %arg9[%c64_80, %c0_81] : memref<144x256xf32, #tpu.memory_space<vmem>>, vector<16x256xf32>
    tpu.vector_store %arg9[%c64_80, %c0_81], %95 {strides = array<i32>} : memref<144x256xf32, #tpu.memory_space<vmem>>, vector<16x256xf32>,
    %c0_82 = arith.constant 0 : index
    %c18_83 = arith.constant 18 : index
    %97 = vector.load %arg8[%c0_82, %c18_83] : memref<16x290xf32, #tpu.memory_space<vmem>>, vector<16x256xf32>
    %cst_84 = arith.constant 0.000000e+00 : f32
    %98 = vector.shape_cast %6 : vector<1x256xi1> to vector<1x256xi1>
    %99 = vector.broadcast %98 : vector<1x256xi1> to vector<16x256xi1>
    %100 = vector.broadcast %cst_84 : f32 to vector<16x256xf32>
    %101 = arith.select %99, %97, %100 : vector<16x256xi1>, vector<16x256xf32>
    %c80_85 = arith.constant 80 : index
    %c0_86 = arith.constant 0 : index
    %102 = vector.load %arg9[%c80_85, %c0_86] : memref<144x256xf32, #tpu.memory_space<vmem>>, vector<16x256xf32>
    tpu.vector_store %arg9[%c80_85, %c0_86], %101 {strides = array<i32>} : memref<144x256xf32, #tpu.memory_space<vmem>>, vector<16x256xf32>,
    %c0_87 = arith.constant 0 : index
    %c32_88 = arith.constant 32 : index
    %103 = vector.load %arg8[%c0_87, %c32_88] : memref<16x290xf32, #tpu.memory_space<vmem>>, vector<16x256xf32>
    %cst_89 = arith.constant 0.000000e+00 : f32
    %104 = vector.shape_cast %4 : vector<1x256xi1> to vector<1x256xi1>
    %105 = vector.broadcast %104 : vector<1x256xi1> to vector<16x256xi1>
    %106 = vector.broadcast %cst_89 : f32 to vector<16x256xf32>
    %107 = arith.select %105, %103, %106 : vector<16x256xi1>, vector<16x256xf32>
    %c96 = arith.constant 96 : index
    %c0_90 = arith.constant 0 : index
    %108 = vector.load %arg9[%c96, %c0_90] : memref<144x256xf32, #tpu.memory_space<vmem>>, vector<16x256xf32>
    tpu.vector_store %arg9[%c96, %c0_90], %107 {strides = array<i32>} : memref<144x256xf32, #tpu.memory_space<vmem>>, vector<16x256xf32>,
    %c0_91 = arith.constant 0 : index
    %c33_92 = arith.constant 33 : index
    %109 = vector.load %arg8[%c0_91, %c33_92] : memref<16x290xf32, #tpu.memory_space<vmem>>, vector<16x256xf32>
    %c112 = arith.constant 112 : index
    %c0_93 = arith.constant 0 : index
    %110 = vector.load %arg9[%c112, %c0_93] : memref<144x256xf32, #tpu.memory_space<vmem>>, vector<16x256xf32>
    tpu.vector_store %arg9[%c112, %c0_93], %109 {strides = array<i32>} : memref<144x256xf32, #tpu.memory_space<vmem>>, vector<16x256xf32>,
    %c0_94 = arith.constant 0 : index
    %c34_95 = arith.constant 34 : index
    %111 = vector.load %arg8[%c0_94, %c34_95] : memref<16x290xf32, #tpu.memory_space<vmem>>, vector<16x256xf32>
    %cst_96 = arith.constant 0.000000e+00 : f32
    %112 = vector.shape_cast %6 : vector<1x256xi1> to vector<1x256xi1>
    %113 = vector.broadcast %112 : vector<1x256xi1> to vector<16x256xi1>
    %114 = vector.broadcast %cst_96 : f32 to vector<16x256xf32>
    %115 = arith.select %113, %111, %114 : vector<16x256xi1>, vector<16x256xf32>
    %c128 = arith.constant 128 : index
    %c0_97 = arith.constant 0 : index
    %116 = vector.load %arg9[%c128, %c0_97] : memref<144x256xf32, #tpu.memory_space<vmem>>, vector<16x256xf32>
    tpu.vector_store %arg9[%c128, %c0_97], %115 {strides = array<i32>} : memref<144x256xf32, #tpu.memory_space<vmem>>, vector<16x256xf32>,
    %c0_98 = arith.constant 0 : index
    %c0_99 = arith.constant 0 : index
    %117 = vector.load %arg9[%c0_98, %c0_99] : memref<144x256xf32, #tpu.memory_space<vmem>>, vector<144x256xf32>
    %cst_100 = arith.constant dense<0.000000e+00> : vector<32x256xf32>
    %118 = tpu.matmul %71, %117, %cst_100 {dimension_numbers = #tpu.dot_dimension_numbers<[1], [0], [0], [1], [0, 0, 1, 1], [], []>} : vector<32x144xf32>, vector<144x256xf32>, vector<32x256xf32> -> vector<32x256xf32>
    %119 = vector.broadcast %9 : vector<32x1xf32> to vector<32x256xf32>
    %120 = arith.addf %118, %119 : vector<32x256xf32>
    %cst_101 = arith.constant 0.000000e+00 : f32
    %121 = vector.broadcast %cst_101 : f32 to vector<32x256xf32>
    %122 = arith.maximumf %120, %121 : vector<32x256xf32>
    %c0_102 = arith.constant 0 : index
    %c0_103 = arith.constant 0 : index
    %123 = vector.load %arg5[%c0_102, %c0_103] : memref<16x32xf32, #tpu.memory_space<vmem>>, vector<16x32xf32>
    %cst_104 = arith.constant dense<0.000000e+00> : vector<16x256xf32>
    %124 = tpu.matmul %123, %122, %cst_104 {dimension_numbers = #tpu.dot_dimension_numbers<[1], [0], [0], [1], [0, 0, 1, 1], [], []>} : vector<16x32xf32>, vector<32x256xf32>, vector<16x256xf32> -> vector<16x256xf32>
    %125 = vector.broadcast %10 : vector<16x1xf32> to vector<16x256xf32>
    %126 = arith.addf %124, %125 : vector<16x256xf32>
    %c0_105 = arith.constant 0 : index
    %c0_106 = arith.constant 0 : index
    %c0_107 = arith.constant 0 : index
    %127 = vector.load %arg7[%c0_105, %c0_106, %c0_107] : memref<1x16x256xf32, #tpu.memory_space<vmem>>, vector<1x16x256xf32>
    %128 = vector.shape_cast %127 : vector<1x16x256xf32> to vector<16x256xf32>
    %129 = vector.shape_cast %126 : vector<16x256xf32> to vector<1x16x256xf32>
    tpu.vector_store %arg7[%c0_105, %c0_106, %c0_107], %129 {strides = array<i32>} : memref<1x16x256xf32, #tpu.memory_space<vmem>>, vector<1x16x256xf32>,
    return
  }
  func.func @transform_0(%arg0: i32) -> (i32, i32, i32) {
    %c0_i32 = arith.constant 0 : i32
    %c0_i32_0 = arith.constant 0 : i32
    %c0_i32_1 = arith.constant 0 : i32
    return %arg0, %c0_i32, %c0_i32_0 : i32, i32, i32
  }
  func.func @transform_1(%arg0: i32) -> (i32, i32) {
    %c0_i32 = arith.constant 0 : i32
    %c0_i32_0 = arith.constant 0 : i32
    %c0_i32_1 = arith.constant 0 : i32
    return %c0_i32, %c0_i32_0 : i32, i32
  }
  func.func @transform_2(%arg0: i32) -> (i32, i32) {
    %c0_i32 = arith.constant 0 : i32
    %c0_i32_0 = arith.constant 0 : i32
    %c0_i32_1 = arith.constant 0 : i32
    return %c0_i32, %c0_i32_0 : i32, i32
  }
  func.func @transform_3(%arg0: i32) -> (i32, i32) {
    %c0_i32 = arith.constant 0 : i32
    %c0_i32_0 = arith.constant 0 : i32
    %c0_i32_1 = arith.constant 0 : i32
    return %c0_i32, %c0_i32_0 : i32, i32
  }
  func.func @transform_4(%arg0: i32) -> (i32, i32) {
    %c0_i32 = arith.constant 0 : i32
    %c0_i32_0 = arith.constant 0 : i32
    %c0_i32_1 = arith.constant 0 : i32
    return %c0_i32, %c0_i32_0 : i32, i32
  }
  func.func @transform_5(%arg0: i32) -> (i32, i32) {
    %c0_i32 = arith.constant 0 : i32
    %c0_i32_0 = arith.constant 0 : i32
    %c0_i32_1 = arith.constant 0 : i32
    return %c0_i32, %c0_i32_0 : i32, i32
  }
  func.func @transform_6(%arg0: i32) -> (i32, i32, i32) {
    %c0_i32 = arith.constant 0 : i32
    %c0_i32_0 = arith.constant 0 : i32
    %c0_i32_1 = arith.constant 0 : i32
    return %arg0, %c0_i32, %c0_i32_0 : i32, i32, i32
  }
}

</mosaic_0001>

<llo_original>
// kernel: mynet_forward.1
$region0: #{mynet_forward.1}
  #allocation0 [shape = 'u32[]', space=smem, size = 0x4, offset = 0x4, fixed_abs, tag = 'smem constant byte address 0x4 - core index']
  #allocation1 [shape = 'u32[72,128]{1,0:T(1,128)}', space=vmem, size = 0x9000, scoped, tag = 'internal scratch']
  #allocation2 [shape = 'f32[16,290]{1,0:T(8,128)}', space=vmem, size = 0x6000, scoped, tag = 'scratch operand']
  #allocation3 [shape = 'f32[144,256]{1,0:T(8,128)}', space=vmem, size = 0x24000, scoped, tag = 'scratch operand']
  %s0 = inlined_call_operand.vmem [shape: f32[2,8,256], index: 0, kind: input, shape index: {}]
  %s1 = inlined_call_operand.vmem [shape: f32[32,72], index: 1, kind: input, shape index: {}]
  %s2 = inlined_call_operand.vmem [shape: f32[16,32], index: 2, kind: input, shape index: {}]
  %s3 = inlined_call_operand.vmem [shape: f32[32,144], index: 3, kind: input, shape index: {}]
  %s4 = inlined_call_operand.vmem [shape: f32[16,32], index: 4, kind: input, shape index: {}]
  %s5 = inlined_call_operand.vmem [shape: f32[96,1], index: 5, kind: input, shape index: {}]
  %s6 = inlined_call_operand.vmem [shape: f32[2,16,256], index: 6, kind: output, shape index: {}]
  %s7 = sld [smem:[#allocation0]]
  $region57: #{mynet_forward.1} parent=0
    _
  %s9 = ssub.s32 1, %s7
  %s10 = scalar_select 0, %s9, %s7
  loop: start=0, step=1, limit=4
  $region2: #{mynet_forward.1} parent=0 // loop_pre_header
    _
  $region3: #{mynet_forward.1} parent=0 // loop_header
    %s12 = sphi 0, %s16
    %p13 = scmp.ge.s32.totalorder %s12, 4
    %s22 = sphi 0, %s24
    %s25 = sphi 0, %s22
    %s26 = sphi 0, %s25
    %s42 = sphi 0, %s26
    %s46 = sphi 0, %s46
    %s48 = sphi 0, %s46
    %s49 = sphi 0, %s48
    %s63 = sphi 0, %s49
    %s67 = sphi 0, %s67
    %s69 = sphi 0, %s67
    %s70 = sphi 0, %s69
    %s84 = sphi 0, %s70
    %s88 = sphi 0, %s88
    %s90 = sphi 0, %s88
    %s91 = sphi 0, %s90
    %s105 = sphi 0, %s91
    %s109 = sphi 0, %s109
    %s111 = sphi 0, %s109
    %s112 = sphi 0, %s111
    %s126 = sphi 0, %s112
    %s130 = sphi 0, %s130
    %s132 = sphi 0, %s130
    %s133 = sphi 0, %s132
    %s147 = sphi 0, %s133
    %s153 = sphi 0, %s155
    %s156 = sphi 0, %s153
    %s157 = sphi 0, %s156
    %s173 = sphi 0, %s157
  $region4: #{mynet_forward.1} parent=0 // loop_header_branch
    %15 = sbr.rel (%p13) target = $region8
  $region5: #{mynet_forward.1} parent=0 // loop_body
    %s17 = ssub.s32 %s12, 1
    %s18 = ssub.s32 %s12, 2
    %s19 = sadd.s32 %s12, 1
    %s20 = ssub.s32 %s12, %s19
    %p21 = scmp.eq.s32.totalorder %s20, 0
    %s23 = sadd.s32 %s22, 1
    %s24 = scalar_select %p21, %s22, %s23
    %p27 = pneg %p21
    %p28 = scmp.eq.s32.totalorder %s12, 1
    %p29 = por %p27, %p28
    %p30 = scmp.ne.s32.totalorder %s22, %s25
    %p31 = scmp.eq.s32.totalorder %s12, 0
    %p32 = por %p30, %p31
    %p33 = scmp.ne.s32.totalorder %s22, %s25
    %p34 = scmp.eq.s32.totalorder %s17, 1
    %p35 = por %p33, %p34
    %p36 = scmp.ne.s32.totalorder %s25, %s26
    %p37 = scmp.eq.s32.totalorder %s17, 0
    %p38 = por %p36, %p37
    %p39 = scmp.ne.s32.totalorder %s25, %s26
    %p40 = scmp.eq.s32.totalorder %s18, 1
    %p41 = por %p39, %p40
    %p43 = scmp.ne.s32.totalorder %s26, %s42
    %p44 = scmp.eq.s32.totalorder %s18, 0
    %p45 = por %p43, %p44
    %s47 = sadd.s32 %s46, 1
    %p50 = scmp.eq.s32.totalorder %s12, 1
    %p51 = scmp.ne.s32.totalorder %s46, %s48
    %p52 = scmp.eq.s32.totalorder %s12, 0
    %p53 = por %p51, %p52
    %p54 = scmp.ne.s32.totalorder %s46, %s48
    %p55 = scmp.eq.s32.totalorder %s17, 1
    %p56 = por %p54, %p55
    %p57 = scmp.ne.s32.totalorder %s48, %s49
    %p58 = scmp.eq.s32.totalorder %s17, 0
    %p59 = por %p57, %p58
    %p60 = scmp.ne.s32.totalorder %s48, %s49
    %p61 = scmp.eq.s32.totalorder %s18, 1
    %p62 = por %p60, %p61
    %p64 = scmp.ne.s32.totalorder %s49, %s63
    %p65 = scmp.eq.s32.totalorder %s18, 0
    %p66 = por %p64, %p65
    %s68 = sadd.s32 %s67, 1
    %p71 = scmp.eq.s32.totalorder %s12, 1
    %p72 = scmp.ne.s32.totalorder %s67, %s69
    %p73 = scmp.eq.s32.totalorder %s12, 0
    %p74 = por %p72, %p73
    %p75 = scmp.ne.s32.totalorder %s67, %s69
    %p76 = scmp.eq.s32.totalorder %s17, 1
    %p77 = por %p75, %p76
    %p78 = scmp.ne.s32.totalorder %s69, %s70
    %p79 = scmp.eq.s32.totalorder %s17, 0
    %p80 = por %p78, %p79
    %p81 = scmp.ne.s32.totalorder %s69, %s70
    %p82 = scmp.eq.s32.totalorder %s18, 1
    %p83 = por %p81, %p82
    %p85 = scmp.ne.s32.totalorder %s70, %s84
    %p86 = scmp.eq.s32.totalorder %s18, 0
    %p87 = por %p85, %p86
    %s89 = sadd.s32 %s88, 1
    %p92 = scmp.eq.s32.totalorder %s12, 1
    %p93 = scmp.ne.s32.totalorder %s88, %s90
    %p94 = scmp.eq.s32.totalorder %s12, 0
    %p95 = por %p93, %p94
    %p96 = scmp.ne.s32.totalorder %s88, %s90
    %p97 = scmp.eq.s32.totalorder %s17, 1
    %p98 = por %p96, %p97
    %p99 = scmp.ne.s32.totalorder %s90, %s91
    %p100 = scmp.eq.s32.totalorder %s17, 0
    %p101 = por %p99, %p100
    %p102 = scmp.ne.s32.totalorder %s90, %s91
    %p103 = scmp.eq.s32.totalorder %s18, 1
    %p104 = por %p102, %p103
    %p106 = scmp.ne.s32.totalorder %s91, %s105
    %p107 = scmp.eq.s32.totalorder %s18, 0
    %p108 = por %p106, %p107
    %s110 = sadd.s32 %s109, 1
    %p113 = scmp.eq.s32.totalorder %s12, 1
    %p114 = scmp.ne.s32.totalorder %s109, %s111
    %p115 = scmp.eq.s32.totalorder %s12, 0
    %p116 = por %p114, %p115
    %p117 = scmp.ne.s32.totalorder %s109, %s111
    %p118 = scmp.eq.s32.totalorder %s17, 1
    %p119 = por %p117, %p118
    %p120 = scmp.ne.s32.totalorder %s111, %s112
    %p121 = scmp.eq.s32.totalorder %s17, 0
    %p122 = por %p120, %p121
    %p123 = scmp.ne.s32.totalorder %s111, %s112
    %p124 = scmp.eq.s32.totalorder %s18, 1
    %p125 = por %p123, %p124
    %p127 = scmp.ne.s32.totalorder %s112, %s126
    %p128 = scmp.eq.s32.totalorder %s18, 0
    %p129 = por %p127, %p128
    %s131 = sadd.s32 %s130, 1
    %p134 = scmp.eq.s32.totalorder %s12, 1
    %p135 = scmp.ne.s32.totalorder %s130, %s132
    %p136 = scmp.eq.s32.totalorder %s12, 0
    %p137 = por %p135, %p136
    %p138 = scmp.ne.s32.totalorder %s130, %s132
    %p139 = scmp.eq.s32.totalorder %s17, 1
    %p140 = por %p138, %p139
    %p141 = scmp.ne.s32.totalorder %s132, %s133
    %p142 = scmp.eq.s32.totalorder %s17, 0
    %p143 = por %p141, %p142
    %p144 = scmp.ne.s32.totalorder %s132, %s133
    %p145 = scmp.eq.s32.totalorder %s18, 1
    %p146 = por %p144, %p145
    %p148 = scmp.ne.s32.totalorder %s133, %s147
    %p149 = scmp.eq.s32.totalorder %s18, 0
    %p150 = por %p148, %p149
    %s151 = ssub.s32 %s12, %s19
    %p152 = scmp.eq.s32.totalorder %s151, 0
    %s154 = sadd.s32 %s153, 1
    %s155 = scalar_select %p152, %s153, %s154
    %p158 = pneg %p152
    %p159 = scmp.eq.s32.totalorder %s12, 1
    %p160 = por %p158, %p159
    %p161 = scmp.ne.s32.totalorder %s153, %s156
    %p162 = scmp.eq.s32.totalorder %s12, 0
    %p163 = por %p161, %p162
    %p164 = scmp.ne.s32.totalorder %s153, %s156
    %p165 = scmp.eq.s32.totalorder %s17, 1
    %p166 = por %p164, %p165
    %p167 = scmp.ne.s32.totalorder %s156, %s157
    %p168 = scmp.eq.s32.totalorder %s17, 0
    %p169 = por %p167, %p168
    %p170 = scmp.ne.s32.totalorder %s156, %s157
    %p171 = scmp.eq.s32.totalorder %s18, 1
    %p172 = por %p170, %p171
    %p174 = scmp.ne.s32.totalorder %s157, %s173
    %p175 = scmp.eq.s32.totalorder %s18, 0
    %p176 = por %p174, %p175
    %p177 = scmp.le.s32.totalorder 1, %s12
    %p178 = scmp.lt.s32.totalorder %s12, 3
    %p179 = pnand %p177, %p178
    %p180 = pneg %p179
    // Predicated region
    $region9: #{mynet_forward.1} parent=5 // pred_check
      _
    $region10: #{mynet_forward.1} parent=5 // pred_check_branch
      %182 = sbr.rel (%p179) target = $region12
    $region11: #{mynet_forward.1} parent=5 // pred_region
      %s183 = ssub.s32 %s12, 1
      // Predicated region
      $region13: #{mynet_forward.1} parent=11 // pred_check
        %p184 = pneg %p59
      $region14: #{mynet_forward.1} parent=11 // pred_check_branch
        %186 = sbr.rel (%p184) target = $region16
      $region15: #{mynet_forward.1} parent=11 // pred_region
        _
      $region16: #{mynet_forward.1} parent=11 // pred_fallthru
        _
      // Predicated region
      $region17: #{mynet_forward.1} parent=11 // pred_check
        %p187 = pneg %p80
      $region18: #{mynet_forward.1} parent=11 // pred_check_branch
        %189 = sbr.rel (%p187) target = $region20
      $region19: #{mynet_forward.1} parent=11 // pred_region
        _
      $region20: #{mynet_forward.1} parent=11 // pred_fallthru
        _
      // Predicated region
      $region21: #{mynet_forward.1} parent=11 // pred_check
        %p190 = pneg %p101
      $region22: #{mynet_forward.1} parent=11 // pred_check_branch
        %192 = sbr.rel (%p190) target = $region24
      $region23: #{mynet_forward.1} parent=11 // pred_region
        _
      $region24: #{mynet_forward.1} parent=11 // pred_fallthru
        _
      // Predicated region
      $region25: #{mynet_forward.1} parent=11 // pred_check
        %p193 = pneg %p122
      $region26: #{mynet_forward.1} parent=11 // pred_check_branch
        %195 = sbr.rel (%p193) target = $region28
      $region27: #{mynet_forward.1} parent=11 // pred_region
        _
      $region28: #{mynet_forward.1} parent=11 // pred_fallthru
        _
      // Predicated region
      $region29: #{mynet_forward.1} parent=11 // pred_check
        %p196 = pneg %p143
      $region30: #{mynet_forward.1} parent=11 // pred_check_branch
        %198 = sbr.rel (%p196) target = $region32
      $region31: #{mynet_forward.1} parent=11 // pred_region
        _
      $region32: #{mynet_forward.1} parent=11 // pred_fallthru
        _
    $region12: #{mynet_forward.1} parent=5 // pred_fallthru
      _
    %p199 = scmp.lt.s32.totalorder %s12, 2
    // Predicated region
    $region33: #{mynet_forward.1} parent=5 // pred_check
      %p200 = pneg %p199
    $region34: #{mynet_forward.1} parent=5 // pred_check_branch
      %202 = sbr.rel (%p200) target = $region36
    $region35: #{mynet_forward.1} parent=5 // pred_region
      // Predicated region
      $region37: #{mynet_forward.1} parent=35 // pred_check
        %p203 = pneg %p32
      $region38: #{mynet_forward.1} parent=35 // pred_check_branch
        %205 = sbr.rel (%p203) target = $region40
      $region39: #{mynet_forward.1} parent=35 // pred_region
        %p206 = scmp.lt.s32.totalorder %s12, 1
        %s207 = scalar_select %p206, %s12, 1
        %s208 = smul.addr %s207, 2
        %s209 = smul.addr %s208, 8
        %s210 = scalar_lea.vmem %s0, %s209
      $region40: #{mynet_forward.1} parent=35 // pred_fallthru
        _
    $region36: #{mynet_forward.1} parent=5 // pred_fallthru
      _
    %p211 = scmp.le.s32.totalorder 1, %s12
    %p212 = scmp.lt.s32.totalorder %s12, 3
    %p213 = pnand %p211, %p212
    %p214 = pneg %p213
    // Predicated region
    $region41: #{mynet_forward.1} parent=5 // pred_check
      _
    $region42: #{mynet_forward.1} parent=5 // pred_check_branch
      %216 = sbr.rel (%p213) target = $region44
    $region43: #{mynet_forward.1} parent=5 // pred_region
      %s217 = ssub.s32 %s12, 1
      %p218 = scmp.lt.s32.totalorder %s17, 1
      %s219 = scalar_select %p218, %s17, 1
      %s220 = smul.addr %s219, 2
      %s221 = smul.addr %s220, 8
      %s222 = scalar_lea.vmem %s0, %s221
      %p223 = pneg %p38
      %p224 = pneg %p35
      %p225 = pneg %p59
      %p226 = pneg %p56
      %p227 = pneg %p80
      %p228 = pneg %p77
      %p229 = pneg %p101
      %p230 = pneg %p98
      %p231 = pneg %p122
      %p232 = pneg %p119
      %p233 = pneg %p143
      %p234 = pneg %p140
      %p235 = pneg %p169
      %p236 = pneg %p166
      %p237 = scmp.lt.s32.totalorder %s17, 1
      %s238 = scalar_select %p237, %s17, 1
      %s239 = smul.addr %s238, 4
      %s240 = smul.addr %s239, 8
      %s241 = scalar_lea.vmem %s6, %s240
      %p242 = scmp.lt.s32.totalorder %s17, 1
      %s243 = scalar_select %p242, %s17, 1
      %s244 = smul.addr %s243, 2
      %s245 = smul.addr %s244, 8
      %s246 = scalar_lea.vmem %s0, %s245
      %p247 = scmp.lt.s32.totalorder %s17, 1
      %s248 = scalar_select %p247, %s17, 1
      %s249 = smul.addr %s248, 4
      %s250 = smul.addr %s249, 8
      %s251 = scalar_lea.vmem %s6, %s250
      %v252 = vlaneseq
      %v253 = vand.u32 %v252, 127
      %v254 = vadd.s32 %v253, 128
      %v255 = vand.u32 %v253, 15
      %v256 = vand.u32 %v254, 15
      %vm257 = vcmp.ne.s32.totalorder %v255, 0
      %vm258 = vcmp.ne.s32.totalorder %v256, 0
      %vm259 = vcmp.ne.s32.totalorder %v255, 15
      %vm260 = vcmp.ne.s32.totalorder %v256, 15
      %v261 = vld [vmem:[%s5] sm:$0xff]
      %v262 = vld [vmem:[%s5 + $0x8] sm:$0xff]
      %v263 = vld [vmem:[%s5 + $0x10] sm:$0xff]
      %v264 = vld [vmem:[%s5 + $0x18] sm:$0xff]
      %v265 = vld [vmem:[%s5 + $0x20] sm:$0xff]
      %v266 = vld [vmem:[%s5 + $0x28] sm:$0xff]
      %v267 = vld [vmem:[%s5 + $0x30] sm:$0xff]
      %v268 = vld [vmem:[%s5 + $0x38] sm:$0xff]
      %v269 = vld [vmem:[%s5 + $0x40] sm:$0xff]
      %v270 = vld [vmem:[%s5 + $0x48] sm:$0xff]
      %v271 = vld [vmem:[%s5 + $0x50] sm:$0xff]
      %v272 = vld [vmem:[%s5 + $0x58] sm:$0xff]
      %v273 = vld [vmem:[%s246] sm:$0xff]
      %v274 = vld [vmem:[%s246 + $0x8] sm:$0xff]
      %v275 = vld [vmem:[%s1] sm:$0xff]
      %v276 = vld [vmem:[%s1 + $0x8] sm:$0xff]
      %v277 = vld [vmem:[%s1 + $0x10] sm:$0xff]
      %v278 = vld [vmem:[%s1 + $0x18] sm:$0xff]
      %279 = vst [vmem:[#allocation2] sm:$0xff] 0.0
      %280 = vst [vmem:[#allocation2 + $0x8] sm:$0xff] 0.0
      %vm281 = vcmask 277504
      %282 = vst.msk [vmem:[#allocation2 + $0x10] sm:$0xff] %vm281, 0.0
      %285 = vrot.lane.b32.xlu0 %v273, 17
      %v286 = vpop.permute.xlu0 %285
      %287 = vrot.lane.b32.xlu0 %v274, 17
      %v288 = vpop.permute.xlu0 %287
      %vm289 = vcmask 138240
      %v290 = vsel %vm289, %v286, %v288
      %vm294 = vcmask 1047688
      %295 = vst.msk [vmem:[#allocation2] sm:$0xff] %vm294, %v286
      %296 = vst [vmem:[#allocation2 + $0x8] sm:$0xff] %v290
      %297 = vst.msk [vmem:[#allocation2 + $0x10] sm:$0xff] %vm289, %v288
      %v298 = vld [vmem:[#allocation2] sm:$0xff]
      %v299 = vld [vmem:[#allocation2 + $0x8] sm:$0xff]
      %v300 = vsel %vm257, 1, 0
      %v301 = vsel %vm258, 1, 0
      %vm302 = vcmp.eq.s32.totalorder %v300, 1
      %vm303 = vcmp.eq.s32.totalorder %v301, 1
      %v304 = vsel %vm302, %v298, 0.0
      %v305 = vsel %vm303, %v299, 0.0
      %306 = vst [vmem:[#allocation3] sm:$0xff] %v304
      %307 = vst [vmem:[#allocation3 + $0x8] sm:$0xff] %v305
      %v308 = vld [vmem:[#allocation2] sm:$0xff]
      %v309 = vld [vmem:[#allocation2 + $0x8] sm:$0xff]
      %v310 = vld [vmem:[#allocation2 + $0x10] sm:$0xff]
      %314 = vrot.lane.b32.xlu0 %v308, 127
      %v315 = vpop.permute.xlu0 %314
      %316 = vrot.lane.b32.xlu0 %v309, 127
      %v317 = vpop.permute.xlu0 %316
      %318 = vrot.lane.b32.xlu0 %v310, 127
      %v319 = vpop.permute.xlu0 %318
      %vm320 = vcmask 1039360
      %v321 = vsel %vm320, %v315, %v317
      %v322 = vsel %vm320, %v317, %v319
      %325 = vst [vmem:[#allocation3 + $0x10] sm:$0xff] %v321
      %326 = vst [vmem:[#allocation3 + $0x18] sm:$0xff] %v322
      %v327 = vld [vmem:[#allocation2] sm:$0xff]
      %v328 = vld [vmem:[#allocation2 + $0x8] sm:$0xff]
      %v329 = vld [vmem:[#allocation2 + $0x10] sm:$0xff]
      %v330 = vsel %vm259, 1, 0
      %v331 = vsel %vm260, 1, 0
      %vm332 = vcmp.eq.s32.totalorder %v330, 1
      %vm333 = vcmp.eq.s32.totalorder %v331, 1
      %337 = vrot.lane.b32.xlu0 %v327, 126
      %v338 = vpop.permute.xlu0 %337
      %339 = vrot.lane.b32.xlu0 %v328, 126
      %v340 = vpop.permute.xlu0 %339
      %341 = vrot.lane.b32.xlu0 %v329, 126
      %v342 = vpop.permute.xlu0 %341
      %vm343 = vcmask 1031168
      %v344 = vsel %vm343, %v338, %v340
      %v345 = vsel %vm343, %v340, %v342
      %v348 = vsel %vm332, %v344, 0.0
      %v349 = vsel %vm333, %v345, 0.0
      %350 = vst [vmem:[#allocation3 + $0x20] sm:$0xff] %v348
      %351 = vst [vmem:[#allocation3 + $0x28] sm:$0xff] %v349
      %v352 = vld [vmem:[#allocation2] sm:$0xff]
      %v353 = vld [vmem:[#allocation2 + $0x8] sm:$0xff]
      %v354 = vld [vmem:[#allocation2 + $0x10] sm:$0xff]
      %358 = vrot.lane.b32.xlu0 %v352, 112
      %v359 = vpop.permute.xlu0 %358
      %360 = vrot.lane.b32.xlu0 %v353, 112
      %v361 = vpop.permute.xlu0 %360
      %362 = vrot.lane.b32.xlu0 %v354, 112
      %v363 = vpop.permute.xlu0 %362
      %vm364 = vcmask 916480
      %v365 = vsel %vm364, %v359, %v361
      %v366 = vsel %vm364, %v361, %v363
      %v369 = vsel %vm302, %v365, 0.0
      %v370 = vsel %vm303, %v366, 0.0
      %371 = vst [vmem:[#allocation3 + $0x30] sm:$0xff] %v369
      %372 = vst [vmem:[#allocation3 + $0x38] sm:$0xff] %v370
      %v373 = vld [vmem:[#allocation2] sm:$0xff]
      %v374 = vld [vmem:[#allocation2 + $0x8] sm:$0xff]
      %v375 = vld [vmem:[#allocation2 + $0x10] sm:$0xff]
      %379 = vrot.lane.b32.xlu0 %v373, 111
      %v380 = vpop.permute.xlu0 %379
      %381 = vrot.lane.b32.xlu0 %v374, 111
      %v382 = vpop.permute.xlu0 %381
      %383 = vrot.lane.b32.xlu0 %v375, 111
      %v384 = vpop.permute.xlu0 %383
      %vm385 = vcmask 908288
      %v386 = vsel %vm385, %v380, %v382
      %v387 = vsel %vm385, %v382, %v384
      %390 = vst [vmem:[#allocation3 + $0x40] sm:$0xff] %v386
      %391 = vst [vmem:[#allocation3 + $0x48] sm:$0xff] %v387
      %v392 = vld [vmem:[#allocation2] sm:$0xff]
      %v393 = vld [vmem:[#allocation2 + $0x8] sm:$0xff]
      %v394 = vld [vmem:[#allocation2 + $0x10] sm:$0xff]
      %398 = vrot.lane.b32.xlu0 %v392, 110
      %v399 = vpop.permute.xlu0 %398
      %400 = vrot.lane.b32.xlu0 %v393, 110
      %v401 = vpop.permute.xlu0 %400
      %402 = vrot.lane.b32.xlu0 %v394, 110
      %v403 = vpop.permute.xlu0 %402
      %vm404 = vcmask 900096
      %v405 = vsel %vm404, %v399, %v401
      %v406 = vsel %vm404, %v401, %v403
      %v409 = vsel %vm332, %v405, 0.0
      %v410 = vsel %vm333, %v406, 0.0
      %411 = vst [vmem:[#allocation3 + $0x50] sm:$0xff] %v409
      %412 = vst [vmem:[#allocation3 + $0x58] sm:$0xff] %v410
      %v413 = vld [vmem:[#allocation2] sm:$0xff]
      %v414 = vld [vmem:[#allocation2 + $0x8] sm:$0xff]
      %v415 = vld [vmem:[#allocation2 + $0x10] sm:$0xff]
      %419 = vrot.lane.b32.xlu0 %v413, 96
      %v420 = vpop.permute.xlu0 %419
      %421 = vrot.lane.b32.xlu0 %v414, 96
      %v422 = vpop.permute.xlu0 %421
      %423 = vrot.lane.b32.xlu0 %v415, 96
      %v424 = vpop.permute.xlu0 %423
      %vm425 = vcmask 785408
      %v426 = vsel %vm425, %v420, %v422
      %v427 = vsel %vm425, %v422, %v424
      %v430 = vsel %vm302, %v426, 0.0
      %v431 = vsel %vm303, %v427, 0.0
      %432 = vst [vmem:[#allocation3 + $0x60] sm:$0xff] %v430
      %433 = vst [vmem:[#allocation3 + $0x68] sm:$0xff] %v431
      %v434 = vld [vmem:[#allocation2] sm:$0xff]
      %v435 = vld [vmem:[#allocation2 + $0x8] sm:$0xff]
      %v436 = vld [vmem:[#allocation2 + $0x10] sm:$0xff]
      %440 = vrot.lane.b32.xlu0 %v434, 95
      %v441 = vpop.permute.xlu0 %440
      %442 = vrot.lane.b32.xlu0 %v435, 95
      %v443 = vpop.permute.xlu0 %442
      %444 = vrot.lane.b32.xlu0 %v436, 95
      %v445 = vpop.permute.xlu0 %444
      %vm446 = vcmask 777216
      %v447 = vsel %vm446, %v441, %v443
      %v448 = vsel %vm446, %v443, %v445
      %451 = vst [vmem:[#allocation3 + $0x70] sm:$0xff] %v447
      %452 = vst [vmem:[#allocation3 + $0x78] sm:$0xff] %v448
      %v453 = vld [vmem:[#allocation2] sm:$0xff]
      %v454 = vld [vmem:[#allocation2 + $0x8] sm:$0xff]
      %v455 = vld [vmem:[#allocation2 + $0x10] sm:$0xff]
      %459 = vrot.lane.b32.xlu0 %v453, 94
      %v460 = vpop.permute.xlu0 %459
      %461 = vrot.lane.b32.xlu0 %v454, 94
      %v462 = vpop.permute.xlu0 %461
      %463 = vrot.lane.b32.xlu0 %v455, 94
      %v464 = vpop.permute.xlu0 %463
      %vm465 = vcmask 769024
      %v466 = vsel %vm465, %v460, %v462
      %v467 = vsel %vm465, %v462, %v464
      %v470 = vsel %vm332, %v466, 0.0
      %v471 = vsel %vm333, %v467, 0.0
      %472 = vst [vmem:[#allocation3 + $0x80] sm:$0xff] %v470
      %473 = vst [vmem:[#allocation3 + $0x88] sm:$0xff] %v471
      %v474 = vld [vmem:[#allocation3] sm:$0xff]
      %v475 = vld [vmem:[#allocation3 + $0x8] sm:$0xff]
      %v476 = vld [vmem:[#allocation3 + $0x10] sm:$0xff]
      %v477 = vld [vmem:[#allocation3 + $0x18] sm:$0xff]
      %v478 = vld [vmem:[#allocation3 + $0x20] sm:$0xff]
      %v479 = vld [vmem:[#allocation3 + $0x28] sm:$0xff]
      %v480 = vld [vmem:[#allocation3 + $0x30] sm:$0xff]
      %v481 = vld [vmem:[#allocation3 + $0x38] sm:$0xff]
      %v482 = vld [vmem:[#allocation3 + $0x40] sm:$0xff]
      %v483 = vld [vmem:[#allocation3 + $0x48] sm:$0xff]
      %v484 = vld [vmem:[#allocation3 + $0x50] sm:$0xff]
      %v485 = vld [vmem:[#allocation3 + $0x58] sm:$0xff]
      %v486 = vld [vmem:[#allocation3 + $0x60] sm:$0xff]
      %v487 = vld [vmem:[#allocation3 + $0x68] sm:$0xff]
      %v488 = vld [vmem:[#allocation3 + $0x70] sm:$0xff]
      %v489 = vld [vmem:[#allocation3 + $0x78] sm:$0xff]
      %v490 = vld [vmem:[#allocation3 + $0x80] sm:$0xff]
      %v491 = vld [vmem:[#allocation3 + $0x88] sm:$0xff]
      %493 = vset.pattern.permute.xlu0 0
      %494 = vperm.xlu0 %493, %v261
      %v495 = vpop.permute.xlu0 %494
      %498 = vset.pattern.permute.xlu0 0
      %499 = vperm.xlu0 %498, %v262
      %v500 = vpop.permute.xlu0 %499
      %503 = vset.pattern.permute.xlu0 0
      %504 = vperm.xlu0 %503, %v263
      %v505 = vpop.permute.xlu0 %504
      %508 = vset.pattern.permute.xlu0 0
      %509 = vperm.xlu0 %508, %v264
      %v510 = vpop.permute.xlu0 %509
      %vm512 = vcmask 588800
      %v514 = vsel %vm512, %v275, 0
      %v517 = vsel %vm512, %v276, 0
      %v520 = vsel %vm512, %v277, 0
      %v523 = vsel %vm512, %v278, 0
      %525 = vmatpush.msra.mxu0 0.0
      %526 = vmatpush.msra.mxu0 0.0
      %527 = vmatpush.msra.mxu0 0.0
      %528 = vmatpush.msra.mxu0 0.0
      %529 = vmatpush.msra.mxu0 0.0
      %530 = vmatpush.msra.mxu0 0.0
      %531 = vmatpush.msra.mxu0 0.0
      %532 = vmatpush.msra.mxu0 %v490
      %533 = vmatpush.msra.mxu0 %v488
      %534 = vmatpush.msra.mxu0 %v486
      %535 = vmatpush.msra.mxu0 %v484
      %536 = vmatpush.msra.mxu0 %v482
      %537 = vmatpush.msra.mxu0 %v480
      %538 = vmatpush.msra.mxu0 %v478
      %539 = vmatpush.msra.mxu0 %v476
      %540 = vmatpush.msra.mxu0 %v474
      %541 = vmatmul.f32.gmra.mxu0 %v514
      %v542 = vpop.f32.mrf.mxu0
      %v543 = vadd.f32 %v495, %v542
      %544 = vmatmul.f32.gmra.mxu0 %v517
      %v545 = vpop.f32.mrf.mxu0
      %v546 = vadd.f32 %v500, %v545
      %547 = vmatmul.f32.gmra.mxu0 %v520
      %v548 = vpop.f32.mrf.mxu0
      %v549 = vadd.f32 %v505, %v548
      %550 = vmatmul.f32.gmra.mxu0 %v523
      %v551 = vpop.f32.mrf.mxu0
      %v552 = vadd.f32 %v510, %v551
      %553 = vdwg.mxu0
      %554 = vmatpush.msra.mxu0 0.0
      %555 = vmatpush.msra.mxu0 0.0
      %556 = vmatpush.msra.mxu0 0.0
      %557 = vmatpush.msra.mxu0 0.0
      %558 = vmatpush.msra.mxu0 0.0
      %559 = vmatpush.msra.mxu0 0.0
      %560 = vmatpush.msra.mxu0 0.0
      %561 = vmatpush.msra.mxu0 %v491
      %562 = vmatpush.msra.mxu0 %v489
      %563 = vmatpush.msra.mxu0 %v487
      %564 = vmatpush.msra.mxu0 %v485
      %565 = vmatpush.msra.mxu0 %v483
      %566 = vmatpush.msra.mxu0 %v481
      %567 = vmatpush.msra.mxu0 %v479
      %568 = vmatpush.msra.mxu0 %v477
      %569 = vmatpush.msra.mxu0 %v475
      %570 = vmatmul.f32.gmra.mxu0 %v514
      %v571 = vpop.f32.mrf.mxu0
      %v572 = vadd.f32 %v495, %v571
      %573 = vmatmul.f32.gmra.mxu0 %v517
      %v574 = vpop.f32.mrf.mxu0
      %v575 = vadd.f32 %v500, %v574
      %576 = vmatmul.f32.gmra.mxu0 %v520
      %v577 = vpop.f32.mrf.mxu0
      %v578 = vadd.f32 %v505, %v577
      %579 = vmatmul.f32.gmra.mxu0 %v523
      %v580 = vpop.f32.mrf.mxu0
      %v581 = vadd.f32 %v510, %v580
      %582 = vdwg.mxu0
      %v583 = vmax.f32 %v543, 0.0
      %v584 = vmax.f32 %v572, 0.0
      %v585 = vmax.f32 %v546, 0.0
      %v586 = vmax.f32 %v575, 0.0
      %v587 = vmax.f32 %v549, 0.0
      %v588 = vmax.f32 %v578, 0.0
      %v589 = vmax.f32 %v552, 0.0
      %v590 = vmax.f32 %v581, 0.0
      %v591 = vld [vmem:[%s2] sm:$0xff]
      %v592 = vld [vmem:[%s2 + $0x8] sm:$0xff]
      %594 = vset.pattern.permute.xlu0 0
      %595 = vperm.xlu0 %594, %v265
      %v596 = vpop.permute.xlu0 %595
      %599 = vset.pattern.permute.xlu0 0
      %600 = vperm.xlu0 %599, %v266
      %v601 = vpop.permute.xlu0 %600
      %vm603 = vcmask 261120
      %v605 = vsel %vm603, %v591, 0
      %v608 = vsel %vm603, %v592, 0
      %610 = vmatpush.msra.mxu0 0.0
      %611 = vmatpush.msra.mxu0 0.0
      %612 = vmatpush.msra.mxu0 0.0
      %613 = vmatpush.msra.mxu0 0.0
      %614 = vmatpush.msra.mxu0 0.0
      %615 = vmatpush.msra.mxu0 0.0
      %616 = vmatpush.msra.mxu0 0.0
      %617 = vmatpush.msra.mxu0 0.0
      %618 = vmatpush.msra.mxu0 0.0
      %619 = vmatpush.msra.mxu0 0.0
      %620 = vmatpush.msra.mxu0 0.0
      %621 = vmatpush.msra.mxu0 0.0
      %622 = vmatpush.msra.mxu0 %v589
      %623 = vmatpush.msra.mxu0 %v587
      %624 = vmatpush.msra.mxu0 %v585
      %625 = vmatpush.msra.mxu0 %v583
      %626 = vmatmul.f32.gmra.mxu0 %v605
      %v627 = vpop.f32.mrf.mxu0
      %v628 = vadd.f32 %v596, %v627
      %629 = vmatmul.f32.gmra.mxu0 %v608
      %v630 = vpop.f32.mrf.mxu0
      %v631 = vadd.f32 %v601, %v630
      %632 = vdwg.mxu0
      %633 = vmatpush.msra.mxu0 0.0
      %634 = vmatpush.msra.mxu0 0.0
      %635 = vmatpush.msra.mxu0 0.0
      %636 = vmatpush.msra.mxu0 0.0
      %637 = vmatpush.msra.mxu0 0.0
      %638 = vmatpush.msra.mxu0 0.0
      %639 = vmatpush.msra.mxu0 0.0
      %640 = vmatpush.msra.mxu0 0.0
      %641 = vmatpush.msra.mxu0 0.0
      %642 = vmatpush.msra.mxu0 0.0
      %643 = vmatpush.msra.mxu0 0.0
      %644 = vmatpush.msra.mxu0 0.0
      %645 = vmatpush.msra.mxu0 %v590
      %646 = vmatpush.msra.mxu0 %v588
      %647 = vmatpush.msra.mxu0 %v586
      %648 = vmatpush.msra.mxu0 %v584
      %649 = vmatmul.f32.gmra.mxu0 %v605
      %v650 = vpop.f32.mrf.mxu0
      %v651 = vadd.f32 %v596, %v650
      %652 = vmatmul.f32.gmra.mxu0 %v608
      %v653 = vpop.f32.mrf.mxu0
      %v654 = vadd.f32 %v601, %v653
      %655 = vdwg.mxu0
      %v656 = vmax.f32 %v628, 0.0
      %v657 = vmax.f32 %v651, 0.0
      %v658 = vmax.f32 %v631, 0.0
      %v659 = vmax.f32 %v654, 0.0
      %v660 = vld [vmem:[%s3] sm:$0xff]
      %v661 = vld [vmem:[%s3 + $0x8] sm:$0xff]
      %v662 = vld [vmem:[%s3 + $0x10] sm:$0xff]
      %v663 = vld [vmem:[%s3 + $0x18] sm:$0xff]
      %v664 = vld [vmem:[%s3 + $0x20] sm:$0xff]
      %v665 = vld [vmem:[%s3 + $0x28] sm:$0xff]
      %v666 = vld [vmem:[%s3 + $0x30] sm:$0xff]
      %v667 = vld [vmem:[%s3 + $0x38] sm:$0xff]
      %668 = vst [vmem:[#allocation2] sm:$0xff] 0.0
      %669 = vst [vmem:[#allocation2 + $0x8] sm:$0xff] 0.0
      %670 = vst.msk [vmem:[#allocation2 + $0x10] sm:$0xff] %vm281, 0.0
      %671 = vst [vmem:[#allocation2 + $0x18] sm:$0xff] 0.0
      %672 = vst [vmem:[#allocation2 + $0x20] sm:$0xff] 0.0
      %673 = vst.msk [vmem:[#allocation2 + $0x28] sm:$0xff] %vm281, 0.0
      %678 = vrot.lane.b32.xlu0 %v656, 17
      %v679 = vpop.permute.xlu0 %678
      %680 = vrot.lane.b32.xlu0 %v657, 17
      %v681 = vpop.permute.xlu0 %680
      %682 = vrot.lane.b32.xlu0 %v658, 17
      %v683 = vpop.permute.xlu0 %682
      %684 = vrot.lane.b32.xlu0 %v659, 17
      %v685 = vpop.permute.xlu0 %684
      %v686 = vsel %vm289, %v679, %v681
      %v687 = vsel %vm289, %v683, %v685
      %694 = vst.msk [vmem:[#allocation2] sm:$0xff] %vm294, %v679
      %695 = vst [vmem:[#allocation2 + $0x8] sm:$0xff] %v686
      %696 = vst.msk [vmem:[#allocation2 + $0x10] sm:$0xff] %vm289, %v681
      %697 = vst.msk [vmem:[#allocation2 + $0x18] sm:$0xff] %vm294, %v683
      %698 = vst [vmem:[#allocation2 + $0x20] sm:$0xff] %v687
      %699 = vst.msk [vmem:[#allocation2 + $0x28] sm:$0xff] %vm289, %v685
      %v700 = vld [vmem:[#allocation2] sm:$0xff]
      %v701 = vld [vmem:[#allocation2 + $0x8] sm:$0xff]
      %v702 = vld [vmem:[#allocation2 + $0x18] sm:$0xff]
      %v703 = vld [vmem:[#allocation2 + $0x20] sm:$0xff]
      %v704 = vsel %vm302, %v700, 0.0
      %v705 = vsel %vm303, %v701, 0.0
      %v706 = vsel %vm302, %v702, 0.0
      %v707 = vsel %vm303, %v703, 0.0
      %708 = vst [vmem:[#allocation3] sm:$0xff] %v704
      %709 = vst [vmem:[#allocation3 + $0x8] sm:$0xff] %v705
      %710 = vst [vmem:[#allocation3 + $0x10] sm:$0xff] %v706
      %711 = vst [vmem:[#allocation3 + $0x18] sm:$0xff] %v707
      %v712 = vld [vmem:[#allocation2] sm:$0xff]
      %v713 = vld [vmem:[#allocation2 + $0x8] sm:$0xff]
      %v714 = vld [vmem:[#allocation2 + $0x10] sm:$0xff]
      %v715 = vld [vmem:[#allocation2 + $0x18] sm:$0xff]
      %v716 = vld [vmem:[#allocation2 + $0x20] sm:$0xff]
      %v717 = vld [vmem:[#allocation2 + $0x28] sm:$0xff]
      %724 = vrot.lane.b32.xlu0 %v712, 127
      %v725 = vpop.permute.xlu0 %724
      %726 = vrot.lane.b32.xlu0 %v713, 127
      %v727 = vpop.permute.xlu0 %726
      %728 = vrot.lane.b32.xlu0 %v714, 127
      %v729 = vpop.permute.xlu0 %728
      %730 = vrot.lane.b32.xlu0 %v715, 127
      %v731 = vpop.permute.xlu0 %730
      %732 = vrot.lane.b32.xlu0 %v716, 127
      %v733 = vpop.permute.xlu0 %732
      %734 = vrot.lane.b32.xlu0 %v717, 127
      %v735 = vpop.permute.xlu0 %734
      %v736 = vsel %vm320, %v725, %v727
      %v737 = vsel %vm320, %v727, %v729
      %v738 = vsel %vm320, %v731, %v733
      %v739 = vsel %vm320, %v733, %v735
      %744 = vst [vmem:[#allocation3 + $0x20] sm:$0xff] %v736
      %745 = vst [vmem:[#allocation3 + $0x28] sm:$0xff] %v737
      %746 = vst [vmem:[#allocation3 + $0x30] sm:$0xff] %v738
      %747 = vst [vmem:[#allocation3 + $0x38] sm:$0xff] %v739
      %v748 = vld [vmem:[#allocation2] sm:$0xff]
      %v749 = vld [vmem:[#allocation2 + $0x8] sm:$0xff]
      %v750 = vld [vmem:[#allocation2 + $0x10] sm:$0xff]
      %v751 = vld [vmem:[#allocation2 + $0x18] sm:$0xff]
      %v752 = vld [vmem:[#allocation2 + $0x20] sm:$0xff]
      %v753 = vld [vmem:[#allocation2 + $0x28] sm:$0xff]
      %760 = vrot.lane.b32.xlu0 %v748, 126
      %v761 = vpop.permute.xlu0 %760
      %762 = vrot.lane.b32.xlu0 %v749, 126
      %v763 = vpop.permute.xlu0 %762
      %764 = vrot.lane.b32.xlu0 %v750, 126
      %v765 = vpop.permute.xlu0 %764
      %766 = vrot.lane.b32.xlu0 %v751, 126
      %v767 = vpop.permute.xlu0 %766
      %768 = vrot.lane.b32.xlu0 %v752, 126
      %v769 = vpop.permute.xlu0 %768
      %770 = vrot.lane.b32.xlu0 %v753, 126
      %v771 = vpop.permute.xlu0 %770
      %v772 = vsel %vm343, %v761, %v763
      %v773 = vsel %vm343, %v763, %v765
      %v774 = vsel %vm343, %v767, %v769
      %v775 = vsel %vm343, %v769, %v771
      %v780 = vsel %vm332, %v772, 0.0
      %v781 = vsel %vm333, %v773, 0.0
      %v782 = vsel %vm332, %v774, 0.0
      %v783 = vsel %vm333, %v775, 0.0
      %784 = vst [vmem:[#allocation3 + $0x40] sm:$0xff] %v780
      %785 = vst [vmem:[#allocation3 + $0x48] sm:$0xff] %v781
      %786 = vst [vmem:[#allocation3 + $0x50] sm:$0xff] %v782
      %787 = vst [vmem:[#allocation3 + $0x58] sm:$0xff] %v783
      %v788 = vld [vmem:[#allocation2] sm:$0xff]
      %v789 = vld [vmem:[#allocation2 + $0x8] sm:$0xff]
      %v790 = vld [vmem:[#allocation2 + $0x10] sm:$0xff]
      %v791 = vld [vmem:[#allocation2 + $0x18] sm:$0xff]
      %v792 = vld [vmem:[#allocation2 + $0x20] sm:$0xff]
      %v793 = vld [vmem:[#allocation2 + $0x28] sm:$0xff]
      %800 = vrot.lane.b32.xlu0 %v788, 112
      %v801 = vpop.permute.xlu0 %800
      %802 = vrot.lane.b32.xlu0 %v789, 112
      %v803 = vpop.permute.xlu0 %802
      %804 = vrot.lane.b32.xlu0 %v790, 112
      %v805 = vpop.permute.xlu0 %804
      %806 = vrot.lane.b32.xlu0 %v791, 112
      %v807 = vpop.permute.xlu0 %806
      %808 = vrot.lane.b32.xlu0 %v792, 112
      %v809 = vpop.permute.xlu0 %808
      %810 = vrot.lane.b32.xlu0 %v793, 112
      %v811 = vpop.permute.xlu0 %810
      %v812 = vsel %vm364, %v801, %v803
      %v813 = vsel %vm364, %v803, %v805
      %v814 = vsel %vm364, %v807, %v809
      %v815 = vsel %vm364, %v809, %v811
      %v820 = vsel %vm302, %v812, 0.0
      %v821 = vsel %vm303, %v813, 0.0
      %v822 = vsel %vm302, %v814, 0.0
      %v823 = vsel %vm303, %v815, 0.0
      %824 = vst [vmem:[#allocation3 + $0x60] sm:$0xff] %v820
      %825 = vst [vmem:[#allocation3 + $0x68] sm:$0xff] %v821
      %826 = vst [vmem:[#allocation3 + $0x70] sm:$0xff] %v822
      %827 = vst [vmem:[#allocation3 + $0x78] sm:$0xff] %v823
      %v828 = vld [vmem:[#allocation2] sm:$0xff]
      %v829 = vld [vmem:[#allocation2 + $0x8] sm:$0xff]
      %v830 = vld [vmem:[#allocation2 + $0x10] sm:$0xff]
      %v831 = vld [vmem:[#allocation2 + $0x18] sm:$0xff]
      %v832 = vld [vmem:[#allocation2 + $0x20] sm:$0xff]
      %v833 = vld [vmem:[#allocation2 + $0x28] sm:$0xff]
      %840 = vrot.lane.b32.xlu0 %v828, 111
      %v841 = vpop.permute.xlu0 %840
      %842 = vrot.lane.b32.xlu0 %v829, 111
      %v843 = vpop.permute.xlu0 %842
      %844 = vrot.lane.b32.xlu0 %v830, 111
      %v845 = vpop.permute.xlu0 %844
      %846 = vrot.lane.b32.xlu0 %v831, 111
      %v847 = vpop.permute.xlu0 %846
      %848 = vrot.lane.b32.xlu0 %v832, 111
      %v849 = vpop.permute.xlu0 %848
      %850 = vrot.lane.b32.xlu0 %v833, 111
      %v851 = vpop.permute.xlu0 %850
      %v852 = vsel %vm385, %v841, %v843
      %v853 = vsel %vm385, %v843, %v845
      %v854 = vsel %vm385, %v847, %v849
      %v855 = vsel %vm385, %v849, %v851
      %860 = vst [vmem:[#allocation3 + $0x80] sm:$0xff] %v852
      %861 = vst [vmem:[#allocation3 + $0x88] sm:$0xff] %v853
      %862 = vst [vmem:[#allocation3 + $0x90] sm:$0xff] %v854
      %863 = vst [vmem:[#allocation3 + $0x98] sm:$0xff] %v855
      %v864 = vld [vmem:[#allocation2] sm:$0xff]
      %v865 = vld [vmem:[#allocation2 + $0x8] sm:$0xff]
      %v866 = vld [vmem:[#allocation2 + $0x10] sm:$0xff]
      %v867 = vld [vmem:[#allocation2 + $0x18] sm:$0xff]
      %v868 = vld [vmem:[#allocation2 + $0x20] sm:$0xff]
      %v869 = vld [vmem:[#allocation2 + $0x28] sm:$0xff]
      %876 = vrot.lane.b32.xlu0 %v864, 110
      %v877 = vpop.permute.xlu0 %876
      %878 = vrot.lane.b32.xlu0 %v865, 110
      %v879 = vpop.permute.xlu0 %878
      %880 = vrot.lane.b32.xlu0 %v866, 110
      %v881 = vpop.permute.xlu0 %880
      %882 = vrot.lane.b32.xlu0 %v867, 110
      %v883 = vpop.permute.xlu0 %882
      %884 = vrot.lane.b32.xlu0 %v868, 110
      %v885 = vpop.permute.xlu0 %884
      %886 = vrot.lane.b32.xlu0 %v869, 110
      %v887 = vpop.permute.xlu0 %886
      %v888 = vsel %vm404, %v877, %v879
      %v889 = vsel %vm404, %v879, %v881
      %v890 = vsel %vm404, %v883, %v885
      %v891 = vsel %vm404, %v885, %v887
      %v896 = vsel %vm332, %v888, 0.0
      %v897 = vsel %vm333, %v889, 0.0
      %v898 = vsel %vm332, %v890, 0.0
      %v899 = vsel %vm333, %v891, 0.0
      %900 = vst [vmem:[#allocation3 + $0xa0] sm:$0xff] %v896
      %901 = vst [vmem:[#allocation3 + $0xa8] sm:$0xff] %v897
      %902 = vst [vmem:[#allocation3 + $0xb0] sm:$0xff] %v898
      %903 = vst [vmem:[#allocation3 + $0xb8] sm:$0xff] %v899
      %v904 = vld [vmem:[#allocation2] sm:$0xff]
      %v905 = vld [vmem:[#allocation2 + $0x8] sm:$0xff]
      %v906 = vld [vmem:[#allocation2 + $0x10] sm:$0xff]
      %v907 = vld [vmem:[#allocation2 + $0x18] sm:$0xff]
      %v908 = vld [vmem:[#allocation2 + $0x20] sm:$0xff]
      %v909 = vld [vmem:[#allocation2 + $0x28] sm:$0xff]
      %916 = vrot.lane.b32.xlu0 %v904, 96
      %v917 = vpop.permute.xlu0 %916
      %918 = vrot.lane.b32.xlu0 %v905, 96
      %v919 = vpop.permute.xlu0 %918
      %920 = vrot.lane.b32.xlu0 %v906, 96
      %v921 = vpop.permute.xlu0 %920
      %922 = vrot.lane.b32.xlu0 %v907, 96
      %v923 = vpop.permute.xlu0 %922
      %924 = vrot.lane.b32.xlu0 %v908, 96
      %v925 = vpop.permute.xlu0 %924
      %926 = vrot.lane.b32.xlu0 %v909, 96
      %v927 = vpop.permute.xlu0 %926
      %v928 = vsel %vm425, %v917, %v919
      %v929 = vsel %vm425, %v919, %v921
      %v930 = vsel %vm425, %v923, %v925
      %v931 = vsel %vm425, %v925, %v927
      %v936 = vsel %vm302, %v928, 0.0
      %v937 = vsel %vm303, %v929, 0.0
      %v938 = vsel %vm302, %v930, 0.0
      %v939 = vsel %vm303, %v931, 0.0
      %940 = vst [vmem:[#allocation3 + $0xc0] sm:$0xff] %v936
      %941 = vst [vmem:[#allocation3 + $0xc8] sm:$0xff] %v937
      %942 = vst [vmem:[#allocation3 + $0xd0] sm:$0xff] %v938
      %943 = vst [vmem:[#allocation3 + $0xd8] sm:$0xff] %v939
      %v944 = vld [vmem:[#allocation2] sm:$0xff]
      %v945 = vld [vmem:[#allocation2 + $0x8] sm:$0xff]
      %v946 = vld [vmem:[#allocation2 + $0x10] sm:$0xff]
      %v947 = vld [vmem:[#allocation2 + $0x18] sm:$0xff]
      %v948 = vld [vmem:[#allocation2 + $0x20] sm:$0xff]
      %v949 = vld [vmem:[#allocation2 + $0x28] sm:$0xff]
      %956 = vrot.lane.b32.xlu0 %v944, 95
      %v957 = vpop.permute.xlu0 %956
      %958 = vrot.lane.b32.xlu0 %v945, 95
      %v959 = vpop.permute.xlu0 %958
      %960 = vrot.lane.b32.xlu0 %v946, 95
      %v961 = vpop.permute.xlu0 %960
      %962 = vrot.lane.b32.xlu0 %v947, 95
      %v963 = vpop.permute.xlu0 %962
      %964 = vrot.lane.b32.xlu0 %v948, 95
      %v965 = vpop.permute.xlu0 %964
      %966 = vrot.lane.b32.xlu0 %v949, 95
      %v967 = vpop.permute.xlu0 %966
      %v968 = vsel %vm446, %v957, %v959
      %v969 = vsel %vm446, %v959, %v961
      %v970 = vsel %vm446, %v963, %v965
      %v971 = vsel %vm446, %v965, %v967
      %976 = vst [vmem:[#allocation3 + $0xe0] sm:$0xff] %v968
      %977 = vst [vmem:[#allocation3 + $0xe8] sm:$0xff] %v969
      %978 = vst [vmem:[#allocation3 + $0xf0] sm:$0xff] %v970
      %979 = vst [vmem:[#allocation3 + $0xf8] sm:$0xff] %v971
      %v980 = vld [vmem:[#allocation2] sm:$0xff]
      %v981 = vld [vmem:[#allocation2 + $0x8] sm:$0xff]
      %v982 = vld [vmem:[#allocation2 + $0x10] sm:$0xff]
      %v983 = vld [vmem:[#allocation2 + $0x18] sm:$0xff]
      %v984 = vld [vmem:[#allocation2 + $0x20] sm:$0xff]
      %v985 = vld [vmem:[#allocation2 + $0x28] sm:$0xff]
      %992 = vrot.lane.b32.xlu0 %v980, 94
      %v993 = vpop.permute.xlu0 %992
      %994 = vrot.lane.b32.xlu0 %v981, 94
      %v995 = vpop.permute.xlu0 %994
      %996 = vrot.lane.b32.xlu0 %v982, 94
      %v997 = vpop.permute.xlu0 %996
      %998 = vrot.lane.b32.xlu0 %v983, 94
      %v999 = vpop.permute.xlu0 %998
      %1000 = vrot.lane.b32.xlu0 %v984, 94
      %v1001 = vpop.permute.xlu0 %1000
      %1002 = vrot.lane.b32.xlu0 %v985, 94
      %v1003 = vpop.permute.xlu0 %1002
      %v1004 = vsel %vm465, %v993, %v995
      %v1005 = vsel %vm465, %v995, %v997
      %v1006 = vsel %vm465, %v999, %v1001
      %v1007 = vsel %vm465, %v1001, %v1003
      %v1012 = vsel %vm332, %v1004, 0.0
      %v1013 = vsel %vm333, %v1005, 0.0
      %v1014 = vsel %vm332, %v1006, 0.0
      %v1015 = vsel %vm333, %v1007, 0.0
      %1016 = vst [vmem:[#allocation3 + $0x100] sm:$0xff] %v1012
      %1017 = vst [vmem:[#allocation3 + $0x108] sm:$0xff] %v1013
      %1018 = vst [vmem:[#allocation3 + $0x110] sm:$0xff] %v1014
      %1019 = vst [vmem:[#allocation3 + $0x118] sm:$0xff] %v1015
      %v1020 = vld [vmem:[#allocation3] sm:$0xff]
      %v1021 = vld [vmem:[#allocation3 + $0x8] sm:$0xff]
      %v1022 = vld [vmem:[#allocation3 + $0x10] sm:$0xff]
      %v1023 = vld [vmem:[#allocation3 + $0x18] sm:$0xff]
      %v1024 = vld [vmem:[#allocation3 + $0x20] sm:$0xff]
      %v1025 = vld [vmem:[#allocation3 + $0x28] sm:$0xff]
      %v1026 = vld [vmem:[#allocation3 + $0x30] sm:$0xff]
      %v1027 = vld [vmem:[#allocation3 + $0x38] sm:$0xff]
      %v1028 = vld [vmem:[#allocation3 + $0x40] sm:$0xff]
      %v1029 = vld [vmem:[#allocation3 + $0x48] sm:$0xff]
      %v1030 = vld [vmem:[#allocation3 + $0x50] sm:$0xff]
      %v1031 = vld [vmem:[#allocation3 + $0x58] sm:$0xff]
      %v1032 = vld [vmem:[#allocation3 + $0x60] sm:$0xff]
      %v1033 = vld [vmem:[#allocation3 + $0x68] sm:$0xff]
      %v1034 = vld [vmem:[#allocation3 + $0x70] sm:$0xff]
      %v1035 = vld [vmem:[#allocation3 + $0x78] sm:$0xff]
      %v1036 = vld [vmem:[#allocation3 + $0x80] sm:$0xff]
      %v1037 = vld [vmem:[#allocation3 + $0x88] sm:$0xff]
      %v1038 = vld [vmem:[#allocation3 + $0x90] sm:$0xff]
      %v1039 = vld [vmem:[#allocation3 + $0x98] sm:$0xff]
      %v1040 = vld [vmem:[#allocation3 + $0xa0] sm:$0xff]
      %v1041 = vld [vmem:[#allocation3 + $0xa8] sm:$0xff]
      %v1042 = vld [vmem:[#allocation3 + $0xb0] sm:$0xff]
      %v1043 = vld [vmem:[#allocation3 + $0xb8] sm:$0xff]
      %v1044 = vld [vmem:[#allocation3 + $0xc0] sm:$0xff]
      %v1045 = vld [vmem:[#allocation3 + $0xc8] sm:$0xff]
      %v1046 = vld [vmem:[#allocation3 + $0xd0] sm:$0xff]
      %v1047 = vld [vmem:[#allocation3 + $0xd8] sm:$0xff]
      %v1048 = vld [vmem:[#allocation3 + $0xe0] sm:$0xff]
      %v1049 = vld [vmem:[#allocation3 + $0xe8] sm:$0xff]
      %v1050 = vld [vmem:[#allocation3 + $0xf0] sm:$0xff]
      %v1051 = vld [vmem:[#allocation3 + $0xf8] sm:$0xff]
      %v1052 = vld [vmem:[#allocation3 + $0x100] sm:$0xff]
      %v1053 = vld [vmem:[#allocation3 + $0x108] sm:$0xff]
      %v1054 = vld [vmem:[#allocation3 + $0x110] sm:$0xff]
      %v1055 = vld [vmem:[#allocation3 + $0x118] sm:$0xff]
      %1057 = vset.pattern.permute.xlu0 0
      %1058 = vperm.xlu0 %1057, %v267
      %v1059 = vpop.permute.xlu0 %1058
      %1062 = vset.pattern.permute.xlu0 0
      %1063 = vperm.xlu0 %1062, %v268
      %v1064 = vpop.permute.xlu0 %1063
      %1067 = vset.pattern.permute.xlu0 0
      %1068 = vperm.xlu0 %1067, %v269
      %v1069 = vpop.permute.xlu0 %1068
      %1072 = vset.pattern.permute.xlu0 0
      %1073 = vperm.xlu0 %1072, %v270
      %v1074 = vpop.permute.xlu0 %1073
      %vm1076 = vcmask 130048
      %v1078 = vsel %vm1076, %v661, 0
      %v1081 = vsel %vm1076, %v663, 0
      %v1084 = vsel %vm1076, %v665, 0
      %v1087 = vsel %vm1076, %v667, 0
      %1089 = vmatpush.msra.mxu0 %v1050
      %1090 = vmatpush.msra.mxu0 %v1048
      %1091 = vmatpush.msra.mxu0 %v1046
      %1092 = vmatpush.msra.mxu0 %v1044
      %1093 = vmatpush.msra.mxu0 %v1042
      %1094 = vmatpush.msra.mxu0 %v1040
      %1095 = vmatpush.msra.mxu0 %v1038
      %1096 = vmatpush.msra.mxu0 %v1036
      %1097 = vmatpush.msra.mxu0 %v1034
      %1098 = vmatpush.msra.mxu0 %v1032
      %1099 = vmatpush.msra.mxu0 %v1030
      %1100 = vmatpush.msra.mxu0 %v1028
      %1101 = vmatpush.msra.mxu0 %v1026
      %1102 = vmatpush.msra.mxu0 %v1024
      %1103 = vmatpush.msra.mxu0 %v1022
      %1104 = vmatpush.msra.mxu0 %v1020
      %1105 = vmatmul.f32.gmra.mxu0 %v660
      %v1106 = vpop.f32.mrf.mxu0
      %v1107 = vadd.f32 %v1059, %v1106
      %1108 = vmatmul.f32.gmra.mxu0 %v662
      %v1109 = vpop.f32.mrf.mxu0
      %v1110 = vadd.f32 %v1064, %v1109
      %1111 = vmatmul.f32.gmra.mxu0 %v664
      %v1112 = vpop.f32.mrf.mxu0
      %v1113 = vadd.f32 %v1069, %v1112
      %1114 = vmatmul.f32.gmra.mxu0 %v666
      %v1115 = vpop.f32.mrf.mxu0
      %v1116 = vadd.f32 %v1074, %v1115
      %1117 = vdwg.mxu0
      %1118 = vmatpush.msra.mxu0 0.0
      %1119 = vmatpush.msra.mxu0 0.0
      %1120 = vmatpush.msra.mxu0 0.0
      %1121 = vmatpush.msra.mxu0 0.0
      %1122 = vmatpush.msra.mxu0 0.0
      %1123 = vmatpush.msra.mxu0 0.0
      %1124 = vmatpush.msra.mxu0 0.0
      %1125 = vmatpush.msra.mxu0 0.0
      %1126 = vmatpush.msra.mxu0 0.0
      %1127 = vmatpush.msra.mxu0 0.0
      %1128 = vmatpush.msra.mxu0 0.0
      %1129 = vmatpush.msra.mxu0 0.0
      %1130 = vmatpush.msra.mxu0 0.0
      %1131 = vmatpush.msra.mxu0 0.0
      %1132 = vmatpush.msra.mxu0 %v1054
      %1133 = vmatpush.msra.mxu0 %v1052
      %1134 = vmatmul.f32.gmra.mxu0 %v1078
      %v1135 = vpop.f32.mrf.mxu0
      %v1136 = vadd.f32 %v1107, %v1135
      %1137 = vmatmul.f32.gmra.mxu0 %v1081
      %v1138 = vpop.f32.mrf.mxu0
      %v1139 = vadd.f32 %v1110, %v1138
      %1140 = vmatmul.f32.gmra.mxu0 %v1084
      %v1141 = vpop.f32.mrf.mxu0
      %v1142 = vadd.f32 %v1113, %v1141
      %1143 = vmatmul.f32.gmra.mxu0 %v1087
      %v1144 = vpop.f32.mrf.mxu0
      %v1145 = vadd.f32 %v1116, %v1144
      %1146 = vdwg.mxu0
      %1147 = vmatpush.msra.mxu0 %v1051
      %1148 = vmatpush.msra.mxu0 %v1049
      %1149 = vmatpush.msra.mxu0 %v1047
      %1150 = vmatpush.msra.mxu0 %v1045
      %1151 = vmatpush.msra.mxu0 %v1043
      %1152 = vmatpush.msra.mxu0 %v1041
      %1153 = vmatpush.msra.mxu0 %v1039
      %1154 = vmatpush.msra.mxu0 %v1037
      %1155 = vmatpush.msra.mxu0 %v1035
      %1156 = vmatpush.msra.mxu0 %v1033
      %1157 = vmatpush.msra.mxu0 %v1031
      %1158 = vmatpush.msra.mxu0 %v1029
      %1159 = vmatpush.msra.mxu0 %v1027
      %1160 = vmatpush.msra.mxu0 %v1025
      %1161 = vmatpush.msra.mxu0 %v1023
      %1162 = vmatpush.msra.mxu0 %v1021
      %1163 = vmatmul.f32.gmra.mxu0 %v660
      %v1164 = vpop.f32.mrf.mxu0
      %v1165 = vadd.f32 %v1059, %v1164
      %1166 = vmatmul.f32.gmra.mxu0 %v662
      %v1167 = vpop.f32.mrf.mxu0
      %v1168 = vadd.f32 %v1064, %v1167
      %1169 = vmatmul.f32.gmra.mxu0 %v664
      %v1170 = vpop.f32.mrf.mxu0
      %v1171 = vadd.f32 %v1069, %v1170
      %1172 = vmatmul.f32.gmra.mxu0 %v666
      %v1173 = vpop.f32.mrf.mxu0
      %v1174 = vadd.f32 %v1074, %v1173
      %1175 = vdwg.mxu0
      %1176 = vmatpush.msra.mxu0 0.0
      %1177 = vmatpush.msra.mxu0 0.0
      %1178 = vmatpush.msra.mxu0 0.0
      %1179 = vmatpush.msra.mxu0 0.0
      %1180 = vmatpush.msra.mxu0 0.0
      %1181 = vmatpush.msra.mxu0 0.0
      %1182 = vmatpush.msra.mxu0 0.0
      %1183 = vmatpush.msra.mxu0 0.0
      %1184 = vmatpush.msra.mxu0 0.0
      %1185 = vmatpush.msra.mxu0 0.0
      %1186 = vmatpush.msra.mxu0 0.0
      %1187 = vmatpush.msra.mxu0 0.0
      %1188 = vmatpush.msra.mxu0 0.0
      %1189 = vmatpush.msra.mxu0 0.0
      %1190 = vmatpush.msra.mxu0 %v1055
      %1191 = vmatpush.msra.mxu0 %v1053
      %1192 = vmatmul.f32.gmra.mxu0 %v1078
      %v1193 = vpop.f32.mrf.mxu0
      %v1194 = vadd.f32 %v1165, %v1193
      %1195 = vmatmul.f32.gmra.mxu0 %v1081
      %v1196 = vpop.f32.mrf.mxu0
      %v1197 = vadd.f32 %v1168, %v1196
      %1198 = vmatmul.f32.gmra.mxu0 %v1084
      %v1199 = vpop.f32.mrf.mxu0
      %v1200 = vadd.f32 %v1171, %v1199
      %1201 = vmatmul.f32.gmra.mxu0 %v1087
      %v1202 = vpop.f32.mrf.mxu0
      %v1203 = vadd.f32 %v1174, %v1202
      %1204 = vdwg.mxu0
      %v1205 = vmax.f32 %v1136, 0.0
      %v1206 = vmax.f32 %v1194, 0.0
      %v1207 = vmax.f32 %v1139, 0.0
      %v1208 = vmax.f32 %v1197, 0.0
      %v1209 = vmax.f32 %v1142, 0.0
      %v1210 = vmax.f32 %v1200, 0.0
      %v1211 = vmax.f32 %v1145, 0.0
      %v1212 = vmax.f32 %v1203, 0.0
      %v1213 = vld [vmem:[%s4] sm:$0xff]
      %v1214 = vld [vmem:[%s4 + $0x8] sm:$0xff]
      %1216 = vset.pattern.permute.xlu0 0
      %1217 = vperm.xlu0 %1216, %v271
      %v1218 = vpop.permute.xlu0 %1217
      %1221 = vset.pattern.permute.xlu0 0
      %1222 = vperm.xlu0 %1221, %v272
      %v1223 = vpop.permute.xlu0 %1222
      %v1226 = vsel %vm603, %v1213, 0
      %v1229 = vsel %vm603, %v1214, 0
      %1231 = vmatpush.msra.mxu0 0.0
      %1232 = vmatpush.msra.mxu0 0.0
      %1233 = vmatpush.msra.mxu0 0.0
      %1234 = vmatpush.msra.mxu0 0.0
      %1235 = vmatpush.msra.mxu0 0.0
      %1236 = vmatpush.msra.mxu0 0.0
      %1237 = vmatpush.msra.mxu0 0.0
      %1238 = vmatpush.msra.mxu0 0.0
      %1239 = vmatpush.msra.mxu0 0.0
      %1240 = vmatpush.msra.mxu0 0.0
      %1241 = vmatpush.msra.mxu0 0.0
      %1242 = vmatpush.msra.mxu0 0.0
      %1243 = vmatpush.msra.mxu0 %v1211
      %1244 = vmatpush.msra.mxu0 %v1209
      %1245 = vmatpush.msra.mxu0 %v1207
      %1246 = vmatpush.msra.mxu0 %v1205
      %1247 = vmatmul.f32.gmra.mxu0 %v1226
      %v1248 = vpop.f32.mrf.mxu0
      %v1249 = vadd.f32 %v1218, %v1248
      %1250 = vmatmul.f32.gmra.mxu0 %v1229
      %v1251 = vpop.f32.mrf.mxu0
      %v1252 = vadd.f32 %v1223, %v1251
      %1253 = vdwg.mxu0
      %1254 = vmatpush.msra.mxu0 0.0
      %1255 = vmatpush.msra.mxu0 0.0
      %1256 = vmatpush.msra.mxu0 0.0
      %1257 = vmatpush.msra.mxu0 0.0
      %1258 = vmatpush.msra.mxu0 0.0
      %1259 = vmatpush.msra.mxu0 0.0
      %1260 = vmatpush.msra.mxu0 0.0
      %1261 = vmatpush.msra.mxu0 0.0
      %1262 = vmatpush.msra.mxu0 0.0
      %1263 = vmatpush.msra.mxu0 0.0
      %1264 = vmatpush.msra.mxu0 0.0
      %1265 = vmatpush.msra.mxu0 0.0
      %1266 = vmatpush.msra.mxu0 %v1212
      %1267 = vmatpush.msra.mxu0 %v1210
      %1268 = vmatpush.msra.mxu0 %v1208
      %1269 = vmatpush.msra.mxu0 %v1206
      %1270 = vmatmul.f32.gmra.mxu0 %v1226
      %v1271 = vpop.f32.mrf.mxu0
      %v1272 = vadd.f32 %v1218, %v1271
      %1273 = vmatmul.f32.gmra.mxu0 %v1229
      %v1274 = vpop.f32.mrf.mxu0
      %v1275 = vadd.f32 %v1223, %v1274
      %1276 = vdwg.mxu0
      %1277 = vst [vmem:[%s251] sm:$0xff] %v1249
      %1278 = vst [vmem:[%s251 + $0x8] sm:$0xff] %v1272
      %1279 = vst [vmem:[%s251 + $0x10] sm:$0xff] %v1252
      %1280 = vst [vmem:[%s251 + $0x18] sm:$0xff] %v1275
      %p1281 = scmp.lt.s32.totalorder %s17, 1
      %s1282 = scalar_select %p1281, %s17, 1
      %s1283 = smul.addr %s1282, 4
      %s1284 = smul.addr %s1283, 8
      %s1285 = scalar_lea.vmem %s6, %s1284
      // Predicated region
      $region45: #{mynet_forward.1} parent=43 // pred_check
        %p1286 = pneg %p166
      $region46: #{mynet_forward.1} parent=43 // pred_check_branch
        %1288 = sbr.rel (%p1286) target = $region48
      $region47: #{mynet_forward.1} parent=43 // pred_region
        _
      $region48: #{mynet_forward.1} parent=43 // pred_fallthru
        _
    $region44: #{mynet_forward.1} parent=5 // pred_fallthru
      _
    %p1289 = scmp.le.s32.totalorder 2, %s12
    // Predicated region
    $region49: #{mynet_forward.1} parent=5 // pred_check
      %p1290 = pneg %p1289
    $region50: #{mynet_forward.1} parent=5 // pred_check_branch
      %1292 = sbr.rel (%p1290) target = $region52
    $region51: #{mynet_forward.1} parent=5 // pred_region
      %s1293 = ssub.s32 %s12, 2
      // Predicated region
      $region53: #{mynet_forward.1} parent=51 // pred_check
        %p1294 = pneg %p172
      $region54: #{mynet_forward.1} parent=51 // pred_check_branch
        %1296 = sbr.rel (%p1294) target = $region56
      $region55: #{mynet_forward.1} parent=51 // pred_region
        %p1297 = scmp.lt.s32.totalorder %s18, 1
        %s1298 = scalar_select %p1297, %s18, 1
        %s1299 = smul.addr %s1298, 4
        %s1300 = smul.addr %s1299, 8
        %s1301 = scalar_lea.vmem %s6, %s1300
      $region56: #{mynet_forward.1} parent=51 // pred_fallthru
        _
    $region52: #{mynet_forward.1} parent=5 // pred_fallthru
      _
  $region6: #{mynet_forward.1} parent=0 // loop_footer
    %s16 = sadd.s32 1, %s12
  $region7: #{mynet_forward.1} parent=0 // loop_footer_branch
    %11 = sbr.rel target = $region3
  $region8: #{mynet_forward.1} parent=0 // loop_exit
    _

</llo_original>
